<compile_context>
chip_gen: v7x
topology: tpu7x:2x2x1
jax: 0.10.0
libtpu: 0.0.40
codegen_flags: <defaults>
</compile_context>

<pallas_src>
import functools
import math

import jax
import jax.numpy as jnp
from jax.experimental import pallas as pl
from jax.experimental.pallas import tpu as pltpu


def _qkv_attn_kernel(q_ref, k_ref, v_ref, out_ref, m_ref, l_ref, acc_ref, *,
                     scale_sq, bh_tile, exp_dtype, matmul_dtype, approx_recip):
    # q_ref  : (bh_tile, ch, TQ)    input dtype
    # k_ref  : (bh_tile, ch, TKV)   input dtype (channels-first, NO wrapper transpose)
    # v_ref  : (bh_tile, ch, TKV)   input dtype
    # out_ref: (bh_tile, ch, TQ)    lane-dense on the sequence axis
    # m_ref, l_ref : (bh_tile, 1, TQ) f32 ; acc_ref : (bh_tile, ch, TQ) f32
    kv_step = pl.program_id(2)
    last_kv = pl.num_programs(2) - 1

    @pl.when(kv_step == 0)
    def _init():
        m_ref[...] = jnp.full(m_ref.shape, -jnp.inf, dtype=m_ref.dtype)
        l_ref[...] = jnp.zeros(l_ref.shape, dtype=l_ref.dtype)
        acc_ref[...] = jnp.zeros(acc_ref.shape, dtype=acc_ref.dtype)

    # Static unroll over folded heads (bh_tile == 1 for L >= 128).
    for i in range(bh_tile):
        q = q_ref[i]        # (ch, TQ)
        k = k_ref[i]        # (ch, TKV)
        v = v_ref[i]        # (ch, TKV)
        if matmul_dtype is not None:        # opt-in for f32 inputs on v5e
            q = q.astype(matmul_dtype)
            k = k.astype(matmul_dtype)
            v = v.astype(matmul_dtype)

        # logits s[kv, t] = sum_c k[c, kv] * q[c, t].  In-kernel tile transpose of
        # K (XLU, cheap) keeps both matmuls plain NN dots on the MXU; the 1/sqrt(ch)
        # scale (== (ch**-0.25)**2) is folded once into the f32 logits.
        s = jnp.dot(k.T, q, preferred_element_type=jnp.float32) * scale_sq   # (TKV, TQ)

        # Online softmax over the KV (sublane) axis; stats are lane-major (1, TQ)
        # so they broadcast directly against the (ch, TQ) accumulator.
        m_prev = m_ref[i]                                             # (1, TQ)
        m_new = jnp.maximum(m_prev, jnp.max(s, axis=0, keepdims=True))
        alpha = jnp.exp(m_prev - m_new)                               # (1, TQ) f32
        # Big-tile exp: bf16 on v6e/v7x roughly halves the binding EUP cost.
        p = jnp.exp((s - m_new).astype(exp_dtype))                    # (TKV, TQ)

        l_ref[i] = alpha * l_ref[i] + jnp.sum(p, axis=0, keepdims=True,
                                              dtype=jnp.float32)
        # acc[c, t] += sum_kv v[c, kv] * p[kv, t]; weights in the matmul dtype.
        acc_ref[i] = alpha * acc_ref[i] + jnp.dot(
            v, p.astype(v.dtype), preferred_element_type=jnp.float32)
        m_ref[i] = m_new

        @pl.when(kv_step == last_kv)
        def _finalize():
            inv_l = pl.reciprocal(l_ref[i], approx=approx_recip)      # (1, TQ)
            out_ref[i] = (acc_ref[i] * inv_l).astype(out_ref.dtype)


def _pick_tile(dim, target):
    """Largest multiple of 128 <= target that divides dim, else the full dim."""
    if dim < 128 or dim % 128 != 0:
        return dim
    t = (min(target, dim) // 128) * 128
    while dim % t != 0:
        t -= 128
    return t


def _largest_divisor_le(n, cap):
    t = min(n, cap)
    while n % t != 0:
        t -= 1
    return t


def qkv_attention(qkv, n_heads, *, tq=None, tkv=None, bh_tile=None,
                  exp_dtype=None, matmul_dtype=None):
    """Pallas implementation of QKVAttention.forward.

    qkv: (bs, 3 * n_heads * ch, length)  ->  (bs, n_heads * ch, length)
    """
    bs, width, length = qkv.shape
    assert width % (3 * n_heads) == 0
    ch = width // (3 * n_heads)
    scale_sq = 1.0 / math.sqrt(ch)          # == (ch ** -0.25) ** 2

    q, k, v = jnp.split(qkv, 3, axis=1)     # each (bs, n_heads*ch, L)
    BH = bs * n_heads
    q = q.reshape(BH, ch, length)           # pure reshapes: no HBM data movement
    k = k.reshape(BH, ch, length)
    v = v.reshape(BH, ch, length)

    # Tile selection (feedback: larger tiles to amortize per-step overhead).
    tq = tq or _pick_tile(length, 512)
    tkv = tkv or _pick_tile(length, 1024)
    assert length % tq == 0 and length % tkv == 0

    # Fold several heads per grid step when L is tiny (overhead amortization).
    if bh_tile is None:
        bh_tile = 1 if length >= 128 else _largest_divisor_le(BH, 8)
    assert BH % bh_tile == 0

    if exp_dtype is None:
        exp_dtype = jnp.bfloat16 if qkv.dtype == jnp.bfloat16 else jnp.float32

    # VMEM budget: double-buffered q/k/v/out blocks + f32 scratch + f32 logits
    # temporaries, capped at ~3/4 of physical VMEM (48 MiB fallback, v7x-safe).
    itemsize = jnp.dtype(qkv.dtype).itemsize
    blocks = 2 * bh_tile * ch * (2 * tq + 2 * tkv) * itemsize
    scratch = bh_tile * (2 * tq + ch * tq) * 4
    temps = 3 * bh_tile * tkv * tq * 4
    est = blocks + scratch + temps
    cap = 48 * 1024 * 1024
    try:
        cap = int(pltpu.get_tpu_info().vmem_capacity_bytes) * 3 // 4
    except Exception:
        pass
    if est > cap:
        raise ValueError(
            f"qkv_attention tile config needs ~{est >> 20} MiB VMEM (cap {cap >> 20} MiB); "
            "pass smaller tq/tkv or pad `length` to a multiple of 128.")
    vmem_limit = min(cap, max(32 * 1024 * 1024, (est * 3) // 2))

    grid = (BH // bh_tile, length // tq, length // tkv)

    kernel = functools.partial(
        _qkv_attn_kernel,
        scale_sq=scale_sq,
        bh_tile=bh_tile,
        exp_dtype=exp_dtype,
        matmul_dtype=matmul_dtype,
        approx_recip=(jnp.dtype(qkv.dtype) == jnp.dtype(jnp.bfloat16)),
    )

    out = pl.pallas_call(
        kernel,
        out_shape=jax.ShapeDtypeStruct((BH, ch, length), qkv.dtype),
        grid_spec=pltpu.PrefetchScalarGridSpec(
            num_scalar_prefetch=0,
            grid=grid,
            in_specs=[
                pl.BlockSpec((bh_tile, ch, tq), lambda b, qi, ki: (b, 0, qi)),    # q
                pl.BlockSpec((bh_tile, ch, tkv), lambda b, qi, ki: (b, 0, ki)),   # k
                pl.BlockSpec((bh_tile, ch, tkv), lambda b, qi, ki: (b, 0, ki)),   # v
            ],
            out_specs=pl.BlockSpec((bh_tile, ch, tq), lambda b, qi, ki: (b, 0, qi)),
            scratch_shapes=[
                pltpu.VMEM((bh_tile, 1, tq), jnp.float32),    # running max  m
                pltpu.VMEM((bh_tile, 1, tq), jnp.float32),    # running sum  l
                pltpu.VMEM((bh_tile, ch, tq), jnp.float32),   # output accumulator
            ],
        ),
        compiler_params=pltpu.CompilerParams(
            dimension_semantics=("parallel", "parallel", "arbitrary"),
            vmem_limit_bytes=vmem_limit,
        ),
    )(q, k, v)                              # (BH, ch, L)

    return out.reshape(bs, n_heads * ch, length)


def _reference_qkv_attention(qkv, n_heads):
    """Pure-JAX reference mirroring the PyTorch forward (computed in f32)."""
    bs, width, length = qkv.shape
    ch = width // (3 * n_heads)
    q, k, v = jnp.split(qkv, 3, axis=1)
    scale = 1.0 / math.sqrt(math.sqrt(ch))
    q = (q.astype(jnp.float32) * scale).reshape(bs * n_heads, ch, length)
    k = (k.astype(jnp.float32) * scale).reshape(bs * n_heads, ch, length)
    v = v.astype(jnp.float32).reshape(bs * n_heads, ch, length)
    w = jnp.einsum('bct,bcs->bts', q, k)
    w = jax.nn.softmax(w, axis=-1)
    a = jnp.einsum('bts,bcs->bct', w, v)
    return a.reshape(bs, -1, length)


if __name__ == "__main__":
    key = jax.random.PRNGKey(0)
    k1, k2 = jax.random.split(key, 2)

    # 1) Small shape (L < 128): exercises the head-folded path (bh_tile > 1),
    #    single grid step, full-array blocks.
    bs, n_heads, ch, length = 2, 2, 8, 16
    qkv = jax.random.normal(k1, (bs, 3 * n_heads * ch, length), dtype=jnp.float32)
    out = jax.block_until_ready(qkv_attention(qkv, n_heads))
    ref = _reference_qkv_attention(qkv, n_heads)
    assert out.shape == (bs, n_heads * ch, length)
    assert jnp.allclose(out, ref, atol=1e-5, rtol=1e-5)

    # 2) Tiled f32 path: multiple query tiles and multiple KV steps (online softmax).
    bs2, n_heads2, ch2, length2 = 1, 2, 32, 512
    qkv2 = jax.random.normal(k2, (bs2, 3 * n_heads2 * ch2, length2), dtype=jnp.float32)
    out2 = jax.block_until_ready(qkv_attention(qkv2, n_heads2, tq=256, tkv=256))
    ref2 = _reference_qkv_attention(qkv2, n_heads2)
    assert out2.shape == (bs2, n_heads2 * ch2, length2)
    assert jnp.allclose(out2, ref2, atol=1e-4, rtol=1e-4)

    # 3) bf16, default tiles: bf16 MXU + bf16-exp EUP path, single KV step.
    qkv3 = qkv2.astype(jnp.bfloat16)
    out3 = jax.block_until_ready(qkv_attention(qkv3, n_heads2))
    ref3 = _reference_qkv_attention(qkv3, n_heads2)
    assert out3.dtype == jnp.bfloat16
    assert jnp.allclose(out3.astype(jnp.float32), ref3, atol=5e-2, rtol=5e-2)

    # 4) bf16 online-softmax path across multiple KV steps.
    out4 = jax.block_until_ready(qkv_attention(qkv3, n_heads2, tq=128, tkv=256))
    assert jnp.allclose(out4.astype(jnp.float32), ref3, atol=5e-2, rtol=5e-2)

    print("KERNEL_OK")
</pallas_src>

<mosaic_0001>
module attributes {stable_mosaic.version = 11 : i64} {
  func.func @_qkv_attn_kernel(%arg0: i32, %arg1: i32, %arg2: i32, %arg3: memref<4x8x16xf32, #tpu.memory_space<vmem>>, %arg4: memref<4x8x16xf32, #tpu.memory_space<vmem>>, %arg5: memref<4x8x16xf32, #tpu.memory_space<vmem>>, %arg6: memref<4x8x16xf32, #tpu.memory_space<vmem>>, %arg7: memref<4x1x16xf32, #tpu.memory_space<vmem>>, %arg8: memref<4x1x16xf32, #tpu.memory_space<vmem>>, %arg9: memref<4x8x16xf32, #tpu.memory_space<vmem>>) attributes {dimension_semantics = [#tpu.dimension_semantics<parallel>, #tpu.dimension_semantics<parallel>, #tpu.dimension_semantics<arbitrary>], iteration_bounds = array<i64: 1, 1, 1>, scalar_prefetch = 0 : i64, scratch_operands = 3 : i64, tpu.core_type = #tpu.core_type<tc>, window_params = [{transform_indices = @transform_0, window_bounds = array<i64: 4, 8, 16>}, {transform_indices = @transform_1, window_bounds = array<i64: 4, 8, 16>}, {transform_indices = @transform_2, window_bounds = array<i64: 4, 8, 16>}, {transform_indices = @transform_3, window_bounds = array<i64: 4, 8, 16>}]} {
    %c0_i32 = arith.constant 0 : i32
    %0 = arith.cmpi eq, %arg2, %c0_i32 : i32
    %1 = arith.extui %0 : i1 to i32
    %c0_i32_0 = arith.constant 0 : i32
    %2 = arith.cmpi ne, %1, %c0_i32_0 : i32
    scf.if %2 {
      %cst_132 = arith.constant 0xFF800000 : f32
      %179 = vector.broadcast %cst_132 : f32 to vector<4x1x16xf32>
      %c0_133 = arith.constant 0 : index
      %c0_134 = arith.constant 0 : index
      %c0_135 = arith.constant 0 : index
      %180 = vector.load %arg7[%c0_133, %c0_134, %c0_135] : memref<4x1x16xf32, #tpu.memory_space<vmem>>, vector<4x1x16xf32>
      tpu.vector_store %arg7[%c0_133, %c0_134, %c0_135], %179 {strides = array<i32>} : memref<4x1x16xf32, #tpu.memory_space<vmem>>, vector<4x1x16xf32>,
      %cst_136 = arith.constant 0.000000e+00 : f32
      %181 = vector.broadcast %cst_136 : f32 to vector<4x1x16xf32>
      %c0_137 = arith.constant 0 : index
      %c0_138 = arith.constant 0 : index
      %c0_139 = arith.constant 0 : index
      %182 = vector.load %arg8[%c0_137, %c0_138, %c0_139] : memref<4x1x16xf32, #tpu.memory_space<vmem>>, vector<4x1x16xf32>
      tpu.vector_store %arg8[%c0_137, %c0_138, %c0_139], %181 {strides = array<i32>} : memref<4x1x16xf32, #tpu.memory_space<vmem>>, vector<4x1x16xf32>,
      %cst_140 = arith.constant 0.000000e+00 : f32
      %183 = vector.broadcast %cst_140 : f32 to vector<4x8x16xf32>
      %c0_141 = arith.constant 0 : index
      %c0_142 = arith.constant 0 : index
      %c0_143 = arith.constant 0 : index
      %184 = vector.load %arg9[%c0_141, %c0_142, %c0_143] : memref<4x8x16xf32, #tpu.memory_space<vmem>>, vector<4x8x16xf32>
      tpu.vector_store %arg9[%c0_141, %c0_142, %c0_143], %183 {strides = array<i32>} : memref<4x8x16xf32, #tpu.memory_space<vmem>>, vector<4x8x16xf32>,
    } else {
    }
    %c0 = arith.constant 0 : index
    %c0_1 = arith.constant 0 : index
    %c0_2 = arith.constant 0 : index
    %3 = vector.load %arg3[%c0, %c0_1, %c0_2] : memref<4x8x16xf32, #tpu.memory_space<vmem>>, vector<1x8x16xf32>
    %4 = vector.shape_cast %3 : vector<1x8x16xf32> to vector<8x16xf32>
    %c0_3 = arith.constant 0 : index
    %c0_4 = arith.constant 0 : index
    %c0_5 = arith.constant 0 : index
    %5 = vector.load %arg4[%c0_3, %c0_4, %c0_5] : memref<4x8x16xf32, #tpu.memory_space<vmem>>, vector<1x8x16xf32>
    %6 = vector.shape_cast %5 : vector<1x8x16xf32> to vector<8x16xf32>
    %c0_6 = arith.constant 0 : index
    %c0_7 = arith.constant 0 : index
    %c0_8 = arith.constant 0 : index
    %7 = vector.load %arg5[%c0_6, %c0_7, %c0_8] : memref<4x8x16xf32, #tpu.memory_space<vmem>>, vector<1x8x16xf32>
    %8 = vector.shape_cast %7 : vector<1x8x16xf32> to vector<8x16xf32>
    %9 = tpu.transpose %6, [1, 0] : vector<8x16xf32> -> vector<16x8xf32>
    %cst = arith.constant dense<0.000000e+00> : vector<16x16xf32>
    %10 = tpu.matmul %9, %4, %cst {dimension_numbers = #tpu.dot_dimension_numbers<[1], [0], [0], [1], [0, 0, 1, 1], [], []>} : vector<16x8xf32>, vector<8x16xf32>, vector<16x16xf32> -> vector<16x16xf32>
    %cst_9 = arith.constant 0.353553385 : f32
    %11 = vector.broadcast %cst_9 : f32 to vector<16x16xf32>
    %12 = arith.mulf %10, %11 : vector<16x16xf32>
    %c0_10 = arith.constant 0 : index
    %c0_11 = arith.constant 0 : index
    %c0_12 = arith.constant 0 : index
    %13 = vector.load %arg7[%c0_10, %c0_11, %c0_12] : memref<4x1x16xf32, #tpu.memory_space<vmem>>, vector<1x1x16xf32>
    %14 = vector.shape_cast %13 : vector<1x1x16xf32> to vector<1x16xf32>
    %cst_13 = arith.constant dense<0xFF800000> : vector<16xf32>
    %15 = vector.multi_reduction <maximumf>, %12, %cst_13 [0] : vector<16x16xf32> to vector<16xf32>
    %16 = vector.shape_cast %15 : vector<16xf32> to vector<1x16xf32>
    %17 = arith.maximumf %14, %16 : vector<1x16xf32>
    %18 = arith.subf %14, %17 : vector<1x16xf32>
    %19 = math.exp %18 : vector<1x16xf32>
    %20 = vector.broadcast %17 : vector<1x16xf32> to vector<16x16xf32>
    %21 = arith.subf %12, %20 : vector<16x16xf32>
    %22 = math.exp %21 : vector<16x16xf32>
    %c0_14 = arith.constant 0 : index
    %c0_15 = arith.constant 0 : index
    %c0_16 = arith.constant 0 : index
    %23 = vector.load %arg8[%c0_14, %c0_15, %c0_16] : memref<4x1x16xf32, #tpu.memory_space<vmem>>, vector<1x1x16xf32>
    %24 = vector.shape_cast %23 : vector<1x1x16xf32> to vector<1x16xf32>
    %25 = arith.mulf %19, %24 : vector<1x16xf32>
    %cst_17 = arith.constant dense<0.000000e+00> : vector<16xf32>
    %26 = vector.multi_reduction <add>, %22, %cst_17 [0] : vector<16x16xf32> to vector<16xf32>
    %27 = vector.shape_cast %26 : vector<16xf32> to vector<1x16xf32>
    %28 = arith.addf %25, %27 : vector<1x16xf32>
    %c0_18 = arith.constant 0 : index
    %c0_19 = arith.constant 0 : index
    %c0_20 = arith.constant 0 : index
    %29 = vector.load %arg8[%c0_18, %c0_19, %c0_20] : memref<4x1x16xf32, #tpu.memory_space<vmem>>, vector<1x1x16xf32>
    %30 = vector.shape_cast %29 : vector<1x1x16xf32> to vector<1x16xf32>
    %31 = vector.shape_cast %28 : vector<1x16xf32> to vector<1x1x16xf32>
    tpu.vector_store %arg8[%c0_18, %c0_19, %c0_20], %31 {strides = array<i32>} : memref<4x1x16xf32, #tpu.memory_space<vmem>>, vector<1x1x16xf32>,
    %c0_21 = arith.constant 0 : index
    %c0_22 = arith.constant 0 : index
    %c0_23 = arith.constant 0 : index
    %32 = vector.load %arg9[%c0_21, %c0_22, %c0_23] : memref<4x8x16xf32, #tpu.memory_space<vmem>>, vector<1x8x16xf32>
    %33 = vector.shape_cast %32 : vector<1x8x16xf32> to vector<8x16xf32>
    %34 = vector.broadcast %19 : vector<1x16xf32> to vector<8x16xf32>
    %35 = arith.mulf %34, %33 : vector<8x16xf32>
    %cst_24 = arith.constant dense<0.000000e+00> : vector<8x16xf32>
    %36 = tpu.matmul %8, %22, %cst_24 {dimension_numbers = #tpu.dot_dimension_numbers<[1], [0], [0], [1], [0, 0, 1, 1], [], []>} : vector<8x16xf32>, vector<16x16xf32>, vector<8x16xf32> -> vector<8x16xf32>
    %37 = arith.addf %35, %36 : vector<8x16xf32>
    %c0_25 = arith.constant 0 : index
    %c0_26 = arith.constant 0 : index
    %c0_27 = arith.constant 0 : index
    %38 = vector.load %arg9[%c0_25, %c0_26, %c0_27] : memref<4x8x16xf32, #tpu.memory_space<vmem>>, vector<1x8x16xf32>
    %39 = vector.shape_cast %38 : vector<1x8x16xf32> to vector<8x16xf32>
    %40 = vector.shape_cast %37 : vector<8x16xf32> to vector<1x8x16xf32>
    tpu.vector_store %arg9[%c0_25, %c0_26, %c0_27], %40 {strides = array<i32>} : memref<4x8x16xf32, #tpu.memory_space<vmem>>, vector<1x8x16xf32>,
    %c0_28 = arith.constant 0 : index
    %c0_29 = arith.constant 0 : index
    %c0_30 = arith.constant 0 : index
    %41 = vector.load %arg7[%c0_28, %c0_29, %c0_30] : memref<4x1x16xf32, #tpu.memory_space<vmem>>, vector<1x1x16xf32>
    %42 = vector.shape_cast %41 : vector<1x1x16xf32> to vector<1x16xf32>
    %43 = vector.shape_cast %17 : vector<1x16xf32> to vector<1x1x16xf32>
    tpu.vector_store %arg7[%c0_28, %c0_29, %c0_30], %43 {strides = array<i32>} : memref<4x1x16xf32, #tpu.memory_space<vmem>>, vector<1x1x16xf32>,
    %c0_i32_31 = arith.constant 0 : i32
    %44 = arith.cmpi eq, %arg2, %c0_i32_31 : i32
    %45 = arith.extui %44 : i1 to i32
    %c0_i32_32 = arith.constant 0 : i32
    %46 = arith.cmpi ne, %45, %c0_i32_32 : i32
    scf.if %46 {
      %c0_132 = arith.constant 0 : index
      %c0_133 = arith.constant 0 : index
      %c0_134 = arith.constant 0 : index
      %179 = vector.load %arg8[%c0_132, %c0_133, %c0_134] : memref<4x1x16xf32, #tpu.memory_space<vmem>>, vector<1x1x16xf32>
      %180 = vector.shape_cast %179 : vector<1x1x16xf32> to vector<1x16xf32>
      %181 = tpu.reciprocal %180 : vector<1x16xf32> -> vector<1x16xf32>
      %c0_135 = arith.constant 0 : index
      %c0_136 = arith.constant 0 : index
      %c0_137 = arith.constant 0 : index
      %182 = vector.load %arg9[%c0_135, %c0_136, %c0_137] : memref<4x8x16xf32, #tpu.memory_space<vmem>>, vector<1x8x16xf32>
      %183 = vector.shape_cast %182 : vector<1x8x16xf32> to vector<8x16xf32>
      %184 = vector.broadcast %181 : vector<1x16xf32> to vector<8x16xf32>
      %185 = arith.mulf %183, %184 : vector<8x16xf32>
      %c0_138 = arith.constant 0 : index
      %c0_139 = arith.constant 0 : index
      %c0_140 = arith.constant 0 : index
      %186 = vector.load %arg6[%c0_138, %c0_139, %c0_140] : memref<4x8x16xf32, #tpu.memory_space<vmem>>, vector<1x8x16xf32>
      %187 = vector.shape_cast %186 : vector<1x8x16xf32> to vector<8x16xf32>
      %188 = vector.shape_cast %185 : vector<8x16xf32> to vector<1x8x16xf32>
      tpu.vector_store %arg6[%c0_138, %c0_139, %c0_140], %188 {strides = array<i32>} : memref<4x8x16xf32, #tpu.memory_space<vmem>>, vector<1x8x16xf32>,
    } else {
    }
    %c1 = arith.constant 1 : index
    %c0_33 = arith.constant 0 : index
    %c0_34 = arith.constant 0 : index
    %47 = vector.load %arg3[%c1, %c0_33, %c0_34] : memref<4x8x16xf32, #tpu.memory_space<vmem>>, vector<1x8x16xf32>
    %48 = vector.shape_cast %47 : vector<1x8x16xf32> to vector<8x16xf32>
    %c1_35 = arith.constant 1 : index
    %c0_36 = arith.constant 0 : index
    %c0_37 = arith.constant 0 : index
    %49 = vector.load %arg4[%c1_35, %c0_36, %c0_37] : memref<4x8x16xf32, #tpu.memory_space<vmem>>, vector<1x8x16xf32>
    %50 = vector.shape_cast %49 : vector<1x8x16xf32> to vector<8x16xf32>
    %c1_38 = arith.constant 1 : index
    %c0_39 = arith.constant 0 : index
    %c0_40 = arith.constant 0 : index
    %51 = vector.load %arg5[%c1_38, %c0_39, %c0_40] : memref<4x8x16xf32, #tpu.memory_space<vmem>>, vector<1x8x16xf32>
    %52 = vector.shape_cast %51 : vector<1x8x16xf32> to vector<8x16xf32>
    %53 = tpu.transpose %50, [1, 0] : vector<8x16xf32> -> vector<16x8xf32>
    %cst_41 = arith.constant dense<0.000000e+00> : vector<16x16xf32>
    %54 = tpu.matmul %53, %48, %cst_41 {dimension_numbers = #tpu.dot_dimension_numbers<[1], [0], [0], [1], [0, 0, 1, 1], [], []>} : vector<16x8xf32>, vector<8x16xf32>, vector<16x16xf32> -> vector<16x16xf32>
    %cst_42 = arith.constant 0.353553385 : f32
    %55 = vector.broadcast %cst_42 : f32 to vector<16x16xf32>
    %56 = arith.mulf %54, %55 : vector<16x16xf32>
    %c1_43 = arith.constant 1 : index
    %c0_44 = arith.constant 0 : index
    %c0_45 = arith.constant 0 : index
    %57 = vector.load %arg7[%c1_43, %c0_44, %c0_45] : memref<4x1x16xf32, #tpu.memory_space<vmem>>, vector<1x1x16xf32>
    %58 = vector.shape_cast %57 : vector<1x1x16xf32> to vector<1x16xf32>
    %cst_46 = arith.constant dense<0xFF800000> : vector<16xf32>
    %59 = vector.multi_reduction <maximumf>, %56, %cst_46 [0] : vector<16x16xf32> to vector<16xf32>
    %60 = vector.shape_cast %59 : vector<16xf32> to vector<1x16xf32>
    %61 = arith.maximumf %58, %60 : vector<1x16xf32>
    %62 = arith.subf %58, %61 : vector<1x16xf32>
    %63 = math.exp %62 : vector<1x16xf32>
    %64 = vector.broadcast %61 : vector<1x16xf32> to vector<16x16xf32>
    %65 = arith.subf %56, %64 : vector<16x16xf32>
    %66 = math.exp %65 : vector<16x16xf32>
    %c1_47 = arith.constant 1 : index
    %c0_48 = arith.constant 0 : index
    %c0_49 = arith.constant 0 : index
    %67 = vector.load %arg8[%c1_47, %c0_48, %c0_49] : memref<4x1x16xf32, #tpu.memory_space<vmem>>, vector<1x1x16xf32>
    %68 = vector.shape_cast %67 : vector<1x1x16xf32> to vector<1x16xf32>
    %69 = arith.mulf %63, %68 : vector<1x16xf32>
    %cst_50 = arith.constant dense<0.000000e+00> : vector<16xf32>
    %70 = vector.multi_reduction <add>, %66, %cst_50 [0] : vector<16x16xf32> to vector<16xf32>
    %71 = vector.shape_cast %70 : vector<16xf32> to vector<1x16xf32>
    %72 = arith.addf %69, %71 : vector<1x16xf32>
    %c1_51 = arith.constant 1 : index
    %c0_52 = arith.constant 0 : index
    %c0_53 = arith.constant 0 : index
    %73 = vector.load %arg8[%c1_51, %c0_52, %c0_53] : memref<4x1x16xf32, #tpu.memory_space<vmem>>, vector<1x1x16xf32>
    %74 = vector.shape_cast %73 : vector<1x1x16xf32> to vector<1x16xf32>
    %75 = vector.shape_cast %72 : vector<1x16xf32> to vector<1x1x16xf32>
    tpu.vector_store %arg8[%c1_51, %c0_52, %c0_53], %75 {strides = array<i32>} : memref<4x1x16xf32, #tpu.memory_space<vmem>>, vector<1x1x16xf32>,
    %c1_54 = arith.constant 1 : index
    %c0_55 = arith.constant 0 : index
    %c0_56 = arith.constant 0 : index
    %76 = vector.load %arg9[%c1_54, %c0_55, %c0_56] : memref<4x8x16xf32, #tpu.memory_space<vmem>>, vector<1x8x16xf32>
    %77 = vector.shape_cast %76 : vector<1x8x16xf32> to vector<8x16xf32>
    %78 = vector.broadcast %63 : vector<1x16xf32> to vector<8x16xf32>
    %79 = arith.mulf %78, %77 : vector<8x16xf32>
    %cst_57 = arith.constant dense<0.000000e+00> : vector<8x16xf32>
    %80 = tpu.matmul %52, %66, %cst_57 {dimension_numbers = #tpu.dot_dimension_numbers<[1], [0], [0], [1], [0, 0, 1, 1], [], []>} : vector<8x16xf32>, vector<16x16xf32>, vector<8x16xf32> -> vector<8x16xf32>
    %81 = arith.addf %79, %80 : vector<8x16xf32>
    %c1_58 = arith.constant 1 : index
    %c0_59 = arith.constant 0 : index
    %c0_60 = arith.constant 0 : index
    %82 = vector.load %arg9[%c1_58, %c0_59, %c0_60] : memref<4x8x16xf32, #tpu.memory_space<vmem>>, vector<1x8x16xf32>
    %83 = vector.shape_cast %82 : vector<1x8x16xf32> to vector<8x16xf32>
    %84 = vector.shape_cast %81 : vector<8x16xf32> to vector<1x8x16xf32>
    tpu.vector_store %arg9[%c1_58, %c0_59, %c0_60], %84 {strides = array<i32>} : memref<4x8x16xf32, #tpu.memory_space<vmem>>, vector<1x8x16xf32>,
    %c1_61 = arith.constant 1 : index
    %c0_62 = arith.constant 0 : index
    %c0_63 = arith.constant 0 : index
    %85 = vector.load %arg7[%c1_61, %c0_62, %c0_63] : memref<4x1x16xf32, #tpu.memory_space<vmem>>, vector<1x1x16xf32>
    %86 = vector.shape_cast %85 : vector<1x1x16xf32> to vector<1x16xf32>
    %87 = vector.shape_cast %61 : vector<1x16xf32> to vector<1x1x16xf32>
    tpu.vector_store %arg7[%c1_61, %c0_62, %c0_63], %87 {strides = array<i32>} : memref<4x1x16xf32, #tpu.memory_space<vmem>>, vector<1x1x16xf32>,
    %c0_i32_64 = arith.constant 0 : i32
    %88 = arith.cmpi eq, %arg2, %c0_i32_64 : i32
    %89 = arith.extui %88 : i1 to i32
    %c0_i32_65 = arith.constant 0 : i32
    %90 = arith.cmpi ne, %89, %c0_i32_65 : i32
    scf.if %90 {
      %c1_132 = arith.constant 1 : index
      %c0_133 = arith.constant 0 : index
      %c0_134 = arith.constant 0 : index
      %179 = vector.load %arg8[%c1_132, %c0_133, %c0_134] : memref<4x1x16xf32, #tpu.memory_space<vmem>>, vector<1x1x16xf32>
      %180 = vector.shape_cast %179 : vector<1x1x16xf32> to vector<1x16xf32>
      %181 = tpu.reciprocal %180 : vector<1x16xf32> -> vector<1x16xf32>
      %c1_135 = arith.constant 1 : index
      %c0_136 = arith.constant 0 : index
      %c0_137 = arith.constant 0 : index
      %182 = vector.load %arg9[%c1_135, %c0_136, %c0_137] : memref<4x8x16xf32, #tpu.memory_space<vmem>>, vector<1x8x16xf32>
      %183 = vector.shape_cast %182 : vector<1x8x16xf32> to vector<8x16xf32>
      %184 = vector.broadcast %181 : vector<1x16xf32> to vector<8x16xf32>
      %185 = arith.mulf %183, %184 : vector<8x16xf32>
      %c1_138 = arith.constant 1 : index
      %c0_139 = arith.constant 0 : index
      %c0_140 = arith.constant 0 : index
      %186 = vector.load %arg6[%c1_138, %c0_139, %c0_140] : memref<4x8x16xf32, #tpu.memory_space<vmem>>, vector<1x8x16xf32>
      %187 = vector.shape_cast %186 : vector<1x8x16xf32> to vector<8x16xf32>
      %188 = vector.shape_cast %185 : vector<8x16xf32> to vector<1x8x16xf32>
      tpu.vector_store %arg6[%c1_138, %c0_139, %c0_140], %188 {strides = array<i32>} : memref<4x8x16xf32, #tpu.memory_space<vmem>>, vector<1x8x16xf32>,
    } else {
    }
    %c2 = arith.constant 2 : index
    %c0_66 = arith.constant 0 : index
    %c0_67 = arith.constant 0 : index
    %91 = vector.load %arg3[%c2, %c0_66, %c0_67] : memref<4x8x16xf32, #tpu.memory_space<vmem>>, vector<1x8x16xf32>
    %92 = vector.shape_cast %91 : vector<1x8x16xf32> to vector<8x16xf32>
    %c2_68 = arith.constant 2 : index
    %c0_69 = arith.constant 0 : index
    %c0_70 = arith.constant 0 : index
    %93 = vector.load %arg4[%c2_68, %c0_69, %c0_70] : memref<4x8x16xf32, #tpu.memory_space<vmem>>, vector<1x8x16xf32>
    %94 = vector.shape_cast %93 : vector<1x8x16xf32> to vector<8x16xf32>
    %c2_71 = arith.constant 2 : index
    %c0_72 = arith.constant 0 : index
    %c0_73 = arith.constant 0 : index
    %95 = vector.load %arg5[%c2_71, %c0_72, %c0_73] : memref<4x8x16xf32, #tpu.memory_space<vmem>>, vector<1x8x16xf32>
    %96 = vector.shape_cast %95 : vector<1x8x16xf32> to vector<8x16xf32>
    %97 = tpu.transpose %94, [1, 0] : vector<8x16xf32> -> vector<16x8xf32>
    %cst_74 = arith.constant dense<0.000000e+00> : vector<16x16xf32>
    %98 = tpu.matmul %97, %92, %cst_74 {dimension_numbers = #tpu.dot_dimension_numbers<[1], [0], [0], [1], [0, 0, 1, 1], [], []>} : vector<16x8xf32>, vector<8x16xf32>, vector<16x16xf32> -> vector<16x16xf32>
    %cst_75 = arith.constant 0.353553385 : f32
    %99 = vector.broadcast %cst_75 : f32 to vector<16x16xf32>
    %100 = arith.mulf %98, %99 : vector<16x16xf32>
    %c2_76 = arith.constant 2 : index
    %c0_77 = arith.constant 0 : index
    %c0_78 = arith.constant 0 : index
    %101 = vector.load %arg7[%c2_76, %c0_77, %c0_78] : memref<4x1x16xf32, #tpu.memory_space<vmem>>, vector<1x1x16xf32>
    %102 = vector.shape_cast %101 : vector<1x1x16xf32> to vector<1x16xf32>
    %cst_79 = arith.constant dense<0xFF800000> : vector<16xf32>
    %103 = vector.multi_reduction <maximumf>, %100, %cst_79 [0] : vector<16x16xf32> to vector<16xf32>
    %104 = vector.shape_cast %103 : vector<16xf32> to vector<1x16xf32>
    %105 = arith.maximumf %102, %104 : vector<1x16xf32>
    %106 = arith.subf %102, %105 : vector<1x16xf32>
    %107 = math.exp %106 : vector<1x16xf32>
    %108 = vector.broadcast %105 : vector<1x16xf32> to vector<16x16xf32>
    %109 = arith.subf %100, %108 : vector<16x16xf32>
    %110 = math.exp %109 : vector<16x16xf32>
    %c2_80 = arith.constant 2 : index
    %c0_81 = arith.constant 0 : index
    %c0_82 = arith.constant 0 : index
    %111 = vector.load %arg8[%c2_80, %c0_81, %c0_82] : memref<4x1x16xf32, #tpu.memory_space<vmem>>, vector<1x1x16xf32>
    %112 = vector.shape_cast %111 : vector<1x1x16xf32> to vector<1x16xf32>
    %113 = arith.mulf %107, %112 : vector<1x16xf32>
    %cst_83 = arith.constant dense<0.000000e+00> : vector<16xf32>
    %114 = vector.multi_reduction <add>, %110, %cst_83 [0] : vector<16x16xf32> to vector<16xf32>
    %115 = vector.shape_cast %114 : vector<16xf32> to vector<1x16xf32>
    %116 = arith.addf %113, %115 : vector<1x16xf32>
    %c2_84 = arith.constant 2 : index
    %c0_85 = arith.constant 0 : index
    %c0_86 = arith.constant 0 : index
    %117 = vector.load %arg8[%c2_84, %c0_85, %c0_86] : memref<4x1x16xf32, #tpu.memory_space<vmem>>, vector<1x1x16xf32>
    %118 = vector.shape_cast %117 : vector<1x1x16xf32> to vector<1x16xf32>
    %119 = vector.shape_cast %116 : vector<1x16xf32> to vector<1x1x16xf32>
    tpu.vector_store %arg8[%c2_84, %c0_85, %c0_86], %119 {strides = array<i32>} : memref<4x1x16xf32, #tpu.memory_space<vmem>>, vector<1x1x16xf32>,
    %c2_87 = arith.constant 2 : index
    %c0_88 = arith.constant 0 : index
    %c0_89 = arith.constant 0 : index
    %120 = vector.load %arg9[%c2_87, %c0_88, %c0_89] : memref<4x8x16xf32, #tpu.memory_space<vmem>>, vector<1x8x16xf32>
    %121 = vector.shape_cast %120 : vector<1x8x16xf32> to vector<8x16xf32>
    %122 = vector.broadcast %107 : vector<1x16xf32> to vector<8x16xf32>
    %123 = arith.mulf %122, %121 : vector<8x16xf32>
    %cst_90 = arith.constant dense<0.000000e+00> : vector<8x16xf32>
    %124 = tpu.matmul %96, %110, %cst_90 {dimension_numbers = #tpu.dot_dimension_numbers<[1], [0], [0], [1], [0, 0, 1, 1], [], []>} : vector<8x16xf32>, vector<16x16xf32>, vector<8x16xf32> -> vector<8x16xf32>
    %125 = arith.addf %123, %124 : vector<8x16xf32>
    %c2_91 = arith.constant 2 : index
    %c0_92 = arith.constant 0 : index
    %c0_93 = arith.constant 0 : index
    %126 = vector.load %arg9[%c2_91, %c0_92, %c0_93] : memref<4x8x16xf32, #tpu.memory_space<vmem>>, vector<1x8x16xf32>
    %127 = vector.shape_cast %126 : vector<1x8x16xf32> to vector<8x16xf32>
    %128 = vector.shape_cast %125 : vector<8x16xf32> to vector<1x8x16xf32>
    tpu.vector_store %arg9[%c2_91, %c0_92, %c0_93], %128 {strides = array<i32>} : memref<4x8x16xf32, #tpu.memory_space<vmem>>, vector<1x8x16xf32>,
    %c2_94 = arith.constant 2 : index
    %c0_95 = arith.constant 0 : index
    %c0_96 = arith.constant 0 : index
    %129 = vector.load %arg7[%c2_94, %c0_95, %c0_96] : memref<4x1x16xf32, #tpu.memory_space<vmem>>, vector<1x1x16xf32>
    %130 = vector.shape_cast %129 : vector<1x1x16xf32> to vector<1x16xf32>
    %131 = vector.shape_cast %105 : vector<1x16xf32> to vector<1x1x16xf32>
    tpu.vector_store %arg7[%c2_94, %c0_95, %c0_96], %131 {strides = array<i32>} : memref<4x1x16xf32, #tpu.memory_space<vmem>>, vector<1x1x16xf32>,
    %c0_i32_97 = arith.constant 0 : i32
    %132 = arith.cmpi eq, %arg2, %c0_i32_97 : i32
    %133 = arith.extui %132 : i1 to i32
    %c0_i32_98 = arith.constant 0 : i32
    %134 = arith.cmpi ne, %133, %c0_i32_98 : i32
    scf.if %134 {
      %c2_132 = arith.constant 2 : index
      %c0_133 = arith.constant 0 : index
      %c0_134 = arith.constant 0 : index
      %179 = vector.load %arg8[%c2_132, %c0_133, %c0_134] : memref<4x1x16xf32, #tpu.memory_space<vmem>>, vector<1x1x16xf32>
      %180 = vector.shape_cast %179 : vector<1x1x16xf32> to vector<1x16xf32>
      %181 = tpu.reciprocal %180 : vector<1x16xf32> -> vector<1x16xf32>
      %c2_135 = arith.constant 2 : index
      %c0_136 = arith.constant 0 : index
      %c0_137 = arith.constant 0 : index
      %182 = vector.load %arg9[%c2_135, %c0_136, %c0_137] : memref<4x8x16xf32, #tpu.memory_space<vmem>>, vector<1x8x16xf32>
      %183 = vector.shape_cast %182 : vector<1x8x16xf32> to vector<8x16xf32>
      %184 = vector.broadcast %181 : vector<1x16xf32> to vector<8x16xf32>
      %185 = arith.mulf %183, %184 : vector<8x16xf32>
      %c2_138 = arith.constant 2 : index
      %c0_139 = arith.constant 0 : index
      %c0_140 = arith.constant 0 : index
      %186 = vector.load %arg6[%c2_138, %c0_139, %c0_140] : memref<4x8x16xf32, #tpu.memory_space<vmem>>, vector<1x8x16xf32>
      %187 = vector.shape_cast %186 : vector<1x8x16xf32> to vector<8x16xf32>
      %188 = vector.shape_cast %185 : vector<8x16xf32> to vector<1x8x16xf32>
      tpu.vector_store %arg6[%c2_138, %c0_139, %c0_140], %188 {strides = array<i32>} : memref<4x8x16xf32, #tpu.memory_space<vmem>>, vector<1x8x16xf32>,
    } else {
    }
    %c3 = arith.constant 3 : index
    %c0_99 = arith.constant 0 : index
    %c0_100 = arith.constant 0 : index
    %135 = vector.load %arg3[%c3, %c0_99, %c0_100] : memref<4x8x16xf32, #tpu.memory_space<vmem>>, vector<1x8x16xf32>
    %136 = vector.shape_cast %135 : vector<1x8x16xf32> to vector<8x16xf32>
    %c3_101 = arith.constant 3 : index
    %c0_102 = arith.constant 0 : index
    %c0_103 = arith.constant 0 : index
    %137 = vector.load %arg4[%c3_101, %c0_102, %c0_103] : memref<4x8x16xf32, #tpu.memory_space<vmem>>, vector<1x8x16xf32>
    %138 = vector.shape_cast %137 : vector<1x8x16xf32> to vector<8x16xf32>
    %c3_104 = arith.constant 3 : index
    %c0_105 = arith.constant 0 : index
    %c0_106 = arith.constant 0 : index
    %139 = vector.load %arg5[%c3_104, %c0_105, %c0_106] : memref<4x8x16xf32, #tpu.memory_space<vmem>>, vector<1x8x16xf32>
    %140 = vector.shape_cast %139 : vector<1x8x16xf32> to vector<8x16xf32>
    %141 = tpu.transpose %138, [1, 0] : vector<8x16xf32> -> vector<16x8xf32>
    %cst_107 = arith.constant dense<0.000000e+00> : vector<16x16xf32>
    %142 = tpu.matmul %141, %136, %cst_107 {dimension_numbers = #tpu.dot_dimension_numbers<[1], [0], [0], [1], [0, 0, 1, 1], [], []>} : vector<16x8xf32>, vector<8x16xf32>, vector<16x16xf32> -> vector<16x16xf32>
    %cst_108 = arith.constant 0.353553385 : f32
    %143 = vector.broadcast %cst_108 : f32 to vector<16x16xf32>
    %144 = arith.mulf %142, %143 : vector<16x16xf32>
    %c3_109 = arith.constant 3 : index
    %c0_110 = arith.constant 0 : index
    %c0_111 = arith.constant 0 : index
    %145 = vector.load %arg7[%c3_109, %c0_110, %c0_111] : memref<4x1x16xf32, #tpu.memory_space<vmem>>, vector<1x1x16xf32>
    %146 = vector.shape_cast %145 : vector<1x1x16xf32> to vector<1x16xf32>
    %cst_112 = arith.constant dense<0xFF800000> : vector<16xf32>
    %147 = vector.multi_reduction <maximumf>, %144, %cst_112 [0] : vector<16x16xf32> to vector<16xf32>
    %148 = vector.shape_cast %147 : vector<16xf32> to vector<1x16xf32>
    %149 = arith.maximumf %146, %148 : vector<1x16xf32>
    %150 = arith.subf %146, %149 : vector<1x16xf32>
    %151 = math.exp %150 : vector<1x16xf32>
    %152 = vector.broadcast %149 : vector<1x16xf32> to vector<16x16xf32>
    %153 = arith.subf %144, %152 : vector<16x16xf32>
    %154 = math.exp %153 : vector<16x16xf32>
    %c3_113 = arith.constant 3 : index
    %c0_114 = arith.constant 0 : index
    %c0_115 = arith.constant 0 : index
    %155 = vector.load %arg8[%c3_113, %c0_114, %c0_115] : memref<4x1x16xf32, #tpu.memory_space<vmem>>, vector<1x1x16xf32>
    %156 = vector.shape_cast %155 : vector<1x1x16xf32> to vector<1x16xf32>
    %157 = arith.mulf %151, %156 : vector<1x16xf32>
    %cst_116 = arith.constant dense<0.000000e+00> : vector<16xf32>
    %158 = vector.multi_reduction <add>, %154, %cst_116 [0] : vector<16x16xf32> to vector<16xf32>
    %159 = vector.shape_cast %158 : vector<16xf32> to vector<1x16xf32>
    %160 = arith.addf %157, %159 : vector<1x16xf32>
    %c3_117 = arith.constant 3 : index
    %c0_118 = arith.constant 0 : index
    %c0_119 = arith.constant 0 : index
    %161 = vector.load %arg8[%c3_117, %c0_118, %c0_119] : memref<4x1x16xf32, #tpu.memory_space<vmem>>, vector<1x1x16xf32>
    %162 = vector.shape_cast %161 : vector<1x1x16xf32> to vector<1x16xf32>
    %163 = vector.shape_cast %160 : vector<1x16xf32> to vector<1x1x16xf32>
    tpu.vector_store %arg8[%c3_117, %c0_118, %c0_119], %163 {strides = array<i32>} : memref<4x1x16xf32, #tpu.memory_space<vmem>>, vector<1x1x16xf32>,
    %c3_120 = arith.constant 3 : index
    %c0_121 = arith.constant 0 : index
    %c0_122 = arith.constant 0 : index
    %164 = vector.load %arg9[%c3_120, %c0_121, %c0_122] : memref<4x8x16xf32, #tpu.memory_space<vmem>>, vector<1x8x16xf32>
    %165 = vector.shape_cast %164 : vector<1x8x16xf32> to vector<8x16xf32>
    %166 = vector.broadcast %151 : vector<1x16xf32> to vector<8x16xf32>
    %167 = arith.mulf %166, %165 : vector<8x16xf32>
    %cst_123 = arith.constant dense<0.000000e+00> : vector<8x16xf32>
    %168 = tpu.matmul %140, %154, %cst_123 {dimension_numbers = #tpu.dot_dimension_numbers<[1], [0], [0], [1], [0, 0, 1, 1], [], []>} : vector<8x16xf32>, vector<16x16xf32>, vector<8x16xf32> -> vector<8x16xf32>
    %169 = arith.addf %167, %168 : vector<8x16xf32>
    %c3_124 = arith.constant 3 : index
    %c0_125 = arith.constant 0 : index
    %c0_126 = arith.constant 0 : index
    %170 = vector.load %arg9[%c3_124, %c0_125, %c0_126] : memref<4x8x16xf32, #tpu.memory_space<vmem>>, vector<1x8x16xf32>
    %171 = vector.shape_cast %170 : vector<1x8x16xf32> to vector<8x16xf32>
    %172 = vector.shape_cast %169 : vector<8x16xf32> to vector<1x8x16xf32>
    tpu.vector_store %arg9[%c3_124, %c0_125, %c0_126], %172 {strides = array<i32>} : memref<4x8x16xf32, #tpu.memory_space<vmem>>, vector<1x8x16xf32>,
    %c3_127 = arith.constant 3 : index
    %c0_128 = arith.constant 0 : index
    %c0_129 = arith.constant 0 : index
    %173 = vector.load %arg7[%c3_127, %c0_128, %c0_129] : memref<4x1x16xf32, #tpu.memory_space<vmem>>, vector<1x1x16xf32>
    %174 = vector.shape_cast %173 : vector<1x1x16xf32> to vector<1x16xf32>
    %175 = vector.shape_cast %149 : vector<1x16xf32> to vector<1x1x16xf32>
    tpu.vector_store %arg7[%c3_127, %c0_128, %c0_129], %175 {strides = array<i32>} : memref<4x1x16xf32, #tpu.memory_space<vmem>>, vector<1x1x16xf32>,
    %c0_i32_130 = arith.constant 0 : i32
    %176 = arith.cmpi eq, %arg2, %c0_i32_130 : i32
    %177 = arith.extui %176 : i1 to i32
    %c0_i32_131 = arith.constant 0 : i32
    %178 = arith.cmpi ne, %177, %c0_i32_131 : i32
    scf.if %178 {
      %c3_132 = arith.constant 3 : index
      %c0_133 = arith.constant 0 : index
      %c0_134 = arith.constant 0 : index
      %179 = vector.load %arg8[%c3_132, %c0_133, %c0_134] : memref<4x1x16xf32, #tpu.memory_space<vmem>>, vector<1x1x16xf32>
      %180 = vector.shape_cast %179 : vector<1x1x16xf32> to vector<1x16xf32>
      %181 = tpu.reciprocal %180 : vector<1x16xf32> -> vector<1x16xf32>
      %c3_135 = arith.constant 3 : index
      %c0_136 = arith.constant 0 : index
      %c0_137 = arith.constant 0 : index
      %182 = vector.load %arg9[%c3_135, %c0_136, %c0_137] : memref<4x8x16xf32, #tpu.memory_space<vmem>>, vector<1x8x16xf32>
      %183 = vector.shape_cast %182 : vector<1x8x16xf32> to vector<8x16xf32>
      %184 = vector.broadcast %181 : vector<1x16xf32> to vector<8x16xf32>
      %185 = arith.mulf %183, %184 : vector<8x16xf32>
      %c3_138 = arith.constant 3 : index
      %c0_139 = arith.constant 0 : index
      %c0_140 = arith.constant 0 : index
      %186 = vector.load %arg6[%c3_138, %c0_139, %c0_140] : memref<4x8x16xf32, #tpu.memory_space<vmem>>, vector<1x8x16xf32>
      %187 = vector.shape_cast %186 : vector<1x8x16xf32> to vector<8x16xf32>
      %188 = vector.shape_cast %185 : vector<8x16xf32> to vector<1x8x16xf32>
      tpu.vector_store %arg6[%c3_138, %c0_139, %c0_140], %188 {strides = array<i32>} : memref<4x8x16xf32, #tpu.memory_space<vmem>>, vector<1x8x16xf32>,
    } else {
    }
    return
  }
  func.func @transform_0(%arg0: i32, %arg1: i32, %arg2: i32) -> (i32, i32, i32) {
    %c0_i32 = arith.constant 0 : i32
    %c0_i32_0 = arith.constant 0 : i32
    return %arg0, %c0_i32, %arg1 : i32, i32, i32
  }
  func.func @transform_1(%arg0: i32, %arg1: i32, %arg2: i32) -> (i32, i32, i32) {
    %c0_i32 = arith.constant 0 : i32
    %c0_i32_0 = arith.constant 0 : i32
    return %arg0, %c0_i32, %arg2 : i32, i32, i32
  }
  func.func @transform_2(%arg0: i32, %arg1: i32, %arg2: i32) -> (i32, i32, i32) {
    %c0_i32 = arith.constant 0 : i32
    %c0_i32_0 = arith.constant 0 : i32
    return %arg0, %c0_i32, %arg2 : i32, i32, i32
  }
  func.func @transform_3(%arg0: i32, %arg1: i32, %arg2: i32) -> (i32, i32, i32) {
    %c0_i32 = arith.constant 0 : i32
    %c0_i32_0 = arith.constant 0 : i32
    return %arg0, %c0_i32, %arg1 : i32, i32, i32
  }
}

</mosaic_0001>

<llo_original>
// kernel: tpu_custom_call.1
$region0: #{tpu_custom_call.1}
  #allocation0 [shape = 'u32[]', space=smem, size = 0x4, offset = 0x4, fixed_abs, tag = 'smem constant byte address 0x4 - core index']
  #allocation1 [shape = 'u32[144,128]{1,0:T(1,128)}', space=vmem, size = 0x12000, scoped, tag = 'internal scratch']
  #allocation2 [shape = 'f32[4,1,16]{2,1,0:T(1,128)}', space=vmem, size = 0x800, scoped, tag = 'scratch operand']
  #allocation3 [shape = 'f32[4,1,16]{2,1,0:T(1,128)}', space=vmem, size = 0x800, scoped, tag = 'scratch operand']
  #allocation4 [shape = 'f32[4,8,16]{2,1,0:T(8,128)}', space=vmem, size = 0x4000, scoped, tag = 'scratch operand']
  %s0 = inlined_call_operand.hbm [shape: f32[4,8,16], index: 0, kind: input, shape index: {}]
  %s1 = inlined_call_operand.hbm [shape: f32[4,8,16], index: 1, kind: input, shape index: {}]
  %s2 = inlined_call_operand.hbm [shape: f32[4,8,16], index: 2, kind: input, shape index: {}]
  %s3 = inlined_call_operand.hbm [shape: f32[4,8,16], index: 3, kind: output, shape index: {}]
  %s4 = sld [smem:[#allocation0]]
  $region54: #{tpu_custom_call.1} parent=0
    _
  %s6 = ssub.s32 1, %s4
  %s7 = scalar_select 0, %s6, %s4
  $region1: #{tpu_custom_call.1} parent=0
    #allocation5 [shape = 'u8[16384]{0}', space=vmem, size = 0x4000, scoped, tag = 'input window, operand 0, single buffered']
    #allocation6 [shape = 's32[1]{0}', space=sflag, size = 0x4, scoped, tag = 'scoped memory for tpu_custom_call.1']
    #allocation7 [shape = 's32[1]{0}', space=sflag, size = 0x4, scoped, tag = 'scoped memory for tpu_custom_call.1']
    #allocation8 [shape = 'u8[16384]{0}', space=vmem, size = 0x4000, scoped, tag = 'input window, operand 1, single buffered']
    #allocation9 [shape = 's32[1]{0}', space=sflag, size = 0x4, scoped, tag = 'scoped memory for tpu_custom_call.1']
    #allocation10 [shape = 'u8[16384]{0}', space=vmem, size = 0x4000, scoped, tag = 'input window, operand 2, single buffered']
    #allocation11 [shape = 'u8[16384]{0}', space=vmem, size = 0x4000, scoped, tag = 'output window, operand 0, single buffered']
    %8 = vsyncpa [#allocation6], 0
    %9 = vsyncpa [#allocation9], 0
    %10 = vsyncpa [#allocation7], 0
    // Predicated region
    $region2: #{tpu_custom_call.1} parent=1 // pred_check
      _
    $region3: #{tpu_custom_call.1} parent=1 // pred_check_branch
      %12 = sbr.rel (0) target = $region5
    $region4: #{tpu_custom_call.1} parent=1 // pred_region
      %s14 = ssub.s32 512, 512
      %15 = vsyncadd [#allocation6], %s14
      %s16 = sshll.u32 [#allocation5], 4
      %s17 = int_to_ptr.vmem [resolvable:$true] %s16
      %22 = dma.hbm_to_vmem [thread:$0]  %s0, 512, %s17, [#allocation6], 128, 128, 8
    $region5: #{tpu_custom_call.1} parent=1 // pred_fallthru
      _
    // Predicated region
    $region6: #{tpu_custom_call.1} parent=1 // pred_check
      _
    $region7: #{tpu_custom_call.1} parent=1 // pred_check_branch
      %24 = sbr.rel (0) target = $region9
    $region8: #{tpu_custom_call.1} parent=1 // pred_region
      %s26 = ssub.s32 512, 512
      %27 = vsyncadd [#allocation9], %s26
      %s28 = sshll.u32 [#allocation8], 4
      %s29 = int_to_ptr.vmem [resolvable:$true] %s28
      %34 = dma.hbm_to_vmem [thread:$0]  %s1, 512, %s29, [#allocation9], 128, 128, 8
    $region9: #{tpu_custom_call.1} parent=1 // pred_fallthru
      _
    // Predicated region
    $region10: #{tpu_custom_call.1} parent=1 // pred_check
      _
    $region11: #{tpu_custom_call.1} parent=1 // pred_check_branch
      %36 = sbr.rel (0) target = $region13
    $region12: #{tpu_custom_call.1} parent=1 // pred_region
      %s38 = ssub.s32 512, 512
      %39 = vsyncadd [#allocation9], %s38
      %s40 = sshll.u32 [#allocation10], 4
      %s41 = int_to_ptr.vmem [resolvable:$true] %s40
      %46 = dma.hbm_to_vmem [thread:$0]  %s2, 512, %s41, [#allocation9], 128, 128, 8
    $region13: #{tpu_custom_call.1} parent=1 // pred_fallthru
      _
    // Predicated region
    $region14: #{tpu_custom_call.1} parent=1 // pred_check
      _
    $region15: #{tpu_custom_call.1} parent=1 // pred_check_branch
      %48 = sbr.rel (0) target = $region17
    $region16: #{tpu_custom_call.1} parent=1 // pred_region
      %49 = dma.done [#allocation6], 512
    $region17: #{tpu_custom_call.1} parent=1 // pred_fallthru
      _
    // Predicated region
    $region18: #{tpu_custom_call.1} parent=1 // pred_check
      _
    $region19: #{tpu_custom_call.1} parent=1 // pred_check_branch
      %51 = sbr.rel (0) target = $region21
    $region20: #{tpu_custom_call.1} parent=1 // pred_region
      %52 = dma.done [#allocation9], 512
    $region21: #{tpu_custom_call.1} parent=1 // pred_fallthru
      _
    // Predicated region
    $region22: #{tpu_custom_call.1} parent=1 // pred_check
      _
    $region23: #{tpu_custom_call.1} parent=1 // pred_check_branch
      %54 = sbr.rel (0) target = $region25
    $region24: #{tpu_custom_call.1} parent=1 // pred_region
      %55 = dma.done [#allocation9], 512
    $region25: #{tpu_custom_call.1} parent=1 // pred_fallthru
      _
    %p56 = scmp.eq.s32.totalorder 0, 0
    // Predicated region
    $region26: #{tpu_custom_call.1} parent=1 // pred_check
      %p57 = pneg %p56
    $region27: #{tpu_custom_call.1} parent=1 // pred_check_branch
      %59 = sbr.rel (%p57) target = $region29
    $region28: #{tpu_custom_call.1} parent=1 // pred_region
      %vm60 = vcmask 122880
      %61 = vst.msk [vmem:[#allocation2] sm:$0x1] %vm60, -inf
      %62 = vst.msk [vmem:[#allocation2 + $0x1] sm:$0x1] %vm60, -inf
      %63 = vst.msk [vmem:[#allocation2 + $0x2] sm:$0x1] %vm60, -inf
      %64 = vst.msk [vmem:[#allocation2 + $0x3] sm:$0x1] %vm60, -inf
      %65 = vst.msk [vmem:[#allocation3] sm:$0x1] %vm60, 0.0
      %66 = vst.msk [vmem:[#allocation3 + $0x1] sm:$0x1] %vm60, 0.0
      %67 = vst.msk [vmem:[#allocation3 + $0x2] sm:$0x1] %vm60, 0.0
      %68 = vst.msk [vmem:[#allocation3 + $0x3] sm:$0x1] %vm60, 0.0
      %vm69 = vcmask 130048
      %70 = vst.msk [vmem:[#allocation4] sm:$0xff] %vm69, 0.0
      %71 = vst.msk [vmem:[#allocation4 + $0x8] sm:$0xff] %vm69, 0.0
      %72 = vst.msk [vmem:[#allocation4 + $0x10] sm:$0xff] %vm69, 0.0
      %73 = vst.msk [vmem:[#allocation4 + $0x18] sm:$0xff] %vm69, 0.0
    $region29: #{tpu_custom_call.1} parent=1 // pred_fallthru
      _
    %v74 = vld [vmem:[#allocation5] sm:$0xff]
    %v75 = vld [vmem:[#allocation8] sm:$0xff]
    %v76 = vld [vmem:[#allocation10] sm:$0xff]
    %77 = vxpose.xlu0.b32.start [1/16] %v75, 128
    %78 = vxpose.xlu0.b32.cont [2/16] 0.0, 128
    %79 = vxpose.xlu0.b32.cont [3/16] 0.0, 128
    %80 = vxpose.xlu0.b32.cont [4/16] 0.0, 128
    %81 = vxpose.xlu0.b32.cont [5/16] 0.0, 128
    %82 = vxpose.xlu0.b32.cont [6/16] 0.0, 128
    %83 = vxpose.xlu0.b32.cont [7/16] 0.0, 128
    %84 = vxpose.xlu0.b32.cont [8/16] 0.0, 128
    %85 = vxpose.xlu0.b32.cont [9/16] 0.0, 128
    %86 = vxpose.xlu0.b32.cont [10/16] 0.0, 128
    %87 = vxpose.xlu0.b32.cont [11/16] 0.0, 128
    %88 = vxpose.xlu0.b32.cont [12/16] 0.0, 128
    %89 = vxpose.xlu0.b32.cont [13/16] 0.0, 128
    %90 = vxpose.xlu0.b32.cont [14/16] 0.0, 128
    %91 = vxpose.xlu0.b32.cont [15/16] 0.0, 128
    %92 = vxpose.xlu0.b32.end [16/16] 0.0, 128
    %v93 = vpop.trf.xlu0
    %v94 = vpop.trf.xlu0
    %v95 = vpop.trf.xlu0
    %v96 = vpop.trf.xlu0
    %v97 = vpop.trf.xlu0
    %v98 = vpop.trf.xlu0
    %v99 = vpop.trf.xlu0
    %v100 = vpop.trf.xlu0
    %v101 = vpop.trf.xlu0
    %v102 = vpop.trf.xlu0
    %v103 = vpop.trf.xlu0
    %v104 = vpop.trf.xlu0
    %v105 = vpop.trf.xlu0
    %v106 = vpop.trf.xlu0
    %v107 = vpop.trf.xlu0
    %v108 = vpop.trf.xlu0
    %vm109 = vcmask 64512
    %v111 = vsel %vm109, %v93, 0
    %v114 = vsel %vm109, %v94, 0
    %116 = vmatprep.subr.mxu0 0.0
    %117 = vmatpush1.msra.mxu0 %v74
    %118 = vmatprep.subr.mxu0 0.0
    %119 = vmatpush1.msra.mxu0 0.0
    %120 = vmatprep.subr.mxu0 0.0
    %121 = vmatpush1.msra.mxu0 0.0
    %122 = vmatprep.subr.mxu0 0.0
    %123 = vmatpush1.msra.mxu0 0.0
    %124 = vmatprep.subr.mxu0 0.0
    %125 = vmatpush1.msra.mxu0 0.0
    %126 = vmatprep.subr.mxu0 0.0
    %127 = vmatpush1.msra.mxu0 0.0
    %128 = vmatprep.subr.mxu0 0.0
    %129 = vmatpush1.msra.mxu0 0.0
    %130 = vmatprep.subr.mxu0 0.0
    %131 = vmatpush1.msra.mxu0 0.0
    %132 = vmatprep.subr.mxu0 0.0
    %133 = vmatpush1.msra.mxu0 0.0
    %134 = vmatprep.subr.mxu0 0.0
    %135 = vmatpush1.msra.mxu0 0.0
    %136 = vmatprep.subr.mxu0 0.0
    %137 = vmatpush1.msra.mxu0 0.0
    %138 = vmatprep.subr.mxu0 0.0
    %139 = vmatpush1.msra.mxu0 0.0
    %140 = vmatprep.subr.mxu0 0.0
    %141 = vmatpush1.msra.mxu0 0.0
    %142 = vmatprep.subr.mxu0 0.0
    %143 = vmatpush1.msra.mxu0 0.0
    %144 = vmatprep.subr.mxu0 0.0
    %145 = vmatpush1.msra.mxu0 0.0
    %146 = vmatprep.subr.mxu0 0.0
    %147 = vmatpush1.msra.mxu0 0.0
    %148 = vmatprep.subr.mxu0 0.0
    %149 = vmatpush1.msra.mxu0 0.0
    %150 = vmatprep.subr.mxu0 0.0
    %151 = vmatpush1.msra.mxu0 0.0
    %152 = vmatprep.subr.mxu0 0.0
    %153 = vmatpush1.msra.mxu0 0.0
    %154 = vmatprep.subr.mxu0 0.0
    %155 = vmatpush1.msra.mxu0 0.0
    %156 = vmatprep.subr.mxu0 0.0
    %157 = vmatpush1.msra.mxu0 0.0
    %158 = vmatprep.subr.mxu0 0.0
    %159 = vmatpush1.msra.mxu0 0.0
    %160 = vmatprep.subr.mxu0 0.0
    %161 = vmatpush1.msra.mxu0 0.0
    %162 = vmatprep.subr.mxu0 0.0
    %163 = vmatpush1.msra.mxu0 0.0
    %164 = vmatprep.subr.mxu0 0.0
    %165 = vmatpush1.msra.mxu0 0.0
    %166 = vmatprep.subr.mxu0 0.0
    %167 = vmatpush1.msra.mxu0 0.0
    %168 = vmatprep.subr.mxu0 0.0
    %169 = vmatpush1.msra.mxu0 0.0
    %170 = vmatprep.subr.mxu0 0.0
    %171 = vmatpush1.msra.mxu0 0.0
    %172 = vmatprep.subr.mxu0 0.0
    %173 = vmatpush1.msra.mxu0 0.0
    %174 = vmatprep.subr.mxu0 0.0
    %175 = vmatpush1.msra.mxu0 0.0
    %176 = vmatprep.subr.mxu0 0.0
    %177 = vmatpush1.msra.mxu0 0.0
    %178 = vmatprep.subr.mxu0 0.0
    %179 = vmatpush1.msra.mxu0 0.0
    %180 = vmatprep.mubr.f32.mxu0 0.0
    %181 = vmatmul.mubr.f32.gmra.mrb[0].mxu0 %v111
    %v182 = vpop.f32.mrb[0].mxu0
    %v183 = vadd.f32 0.0, %v182
    %v184 = vpop.f32.mrb[0].mxu0
    %185 = vmatprep.mubr.f32.mxu0 0.0
    %186 = vmatmul.mubr.f32.gmra.mrb[0].mxu0 %v114
    %v187 = vpop.f32.mrb[0].mxu0
    %v188 = vadd.f32 0.0, %v187
    %v189 = vpop.f32.mrb[0].mxu0
    %190 = vdwg.mxu0
    %v191 = vmul.f32 %v183, 0.35355338
    %v192 = vmul.f32 %v188, 0.35355338
    %v193 = vld [vmem:[#allocation2] sm:$0x1]
    %vm194 = vcmask 130048
    %v195 = vsel %vm194, %v191, -inf
    %v196 = vsel %vm194, %v192, -inf
    %v197 = vmax.f32 %v195, %v196
    %v198 = vrot.slane %v197, 4
    %v199 = vmax.f32 %v197, %v198
    %v200 = vrot.slane %v199, 2
    %v201 = vmax.f32 %v199, %v200
    %v202 = vrot.slane %v201, 1
    %v203 = vmax.f32 %v201, %v202
    %v204 = vmax.f32 %v193, %v203
    %v205 = vsub.f32 %v193, %v204
    %v206 = vmul.f32 %v205, 1.442695
    %v207 = vpow.pop %v206
    %v209 = vlaneseq
    %v210 = vshrl.u32 %v209, 7
    %v211 = vsub.s32 0, %v210
    %v212 = vrot.slane %v204, %v211
    %v214 = vsub.f32 %v191, %v212
    %v215 = vsub.f32 %v192, %v212
    %v216 = vmul.f32 %v214, 1.442695
    %v217 = vpow.pop %v216
    %v218 = vmul.f32 %v215, 1.442695
    %v219 = vpow.pop %v218
    %v220 = vld [vmem:[#allocation3] sm:$0x1]
    %v221 = vmul.f32 %v207, %v220
    %v222 = vsel %vm194, %v217, 0.0
    %v223 = vsel %vm194, %v219, 0.0
    %v224 = vadd.f32 %v222, %v223
    %v225 = vrot.slane %v224, 4
    %v226 = vadd.f32 %v224, %v225
    %v227 = vrot.slane %v226, 2
    %v228 = vadd.f32 %v226, %v227
    %v229 = vrot.slane %v228, 1
    %v230 = vadd.f32 %v228, %v229
    %v231 = vadd.f32 %v221, %v230
    %vm232 = vcmask 122880
    %233 = vst.msk [vmem:[#allocation3] sm:$0x1] %vm232, %v231
    %v234 = vld [vmem:[#allocation4] sm:$0xff]
    %v236 = vlaneseq
    %v237 = vshrl.u32 %v236, 7
    %v238 = vsub.s32 0, %v237
    %v239 = vrot.slane %v207, %v238
    %v241 = vmul.f32 %v239, %v234
    %v243 = vsel %vm194, %v76, 0
    %245 = vmatprep.subr.mxu0 0.0
    %246 = vmatpush1.msra.mxu0 %v217
    %247 = vmatprep.subr.mxu0 0.0
    %248 = vmatpush1.msra.mxu0 %v219
    %249 = vmatprep.subr.mxu0 0.0
    %250 = vmatpush1.msra.mxu0 0.0
    %251 = vmatprep.subr.mxu0 0.0
    %252 = vmatpush1.msra.mxu0 0.0
    %253 = vmatprep.subr.mxu0 0.0
    %254 = vmatpush1.msra.mxu0 0.0
    %255 = vmatprep.subr.mxu0 0.0
    %256 = vmatpush1.msra.mxu0 0.0
    %257 = vmatprep.subr.mxu0 0.0
    %258 = vmatpush1.msra.mxu0 0.0
    %259 = vmatprep.subr.mxu0 0.0
    %260 = vmatpush1.msra.mxu0 0.0
    %261 = vmatprep.subr.mxu0 0.0
    %262 = vmatpush1.msra.mxu0 0.0
    %263 = vmatprep.subr.mxu0 0.0
    %264 = vmatpush1.msra.mxu0 0.0
    %265 = vmatprep.subr.mxu0 0.0
    %266 = vmatpush1.msra.mxu0 0.0
    %267 = vmatprep.subr.mxu0 0.0
    %268 = vmatpush1.msra.mxu0 0.0
    %269 = vmatprep.subr.mxu0 0.0
    %270 = vmatpush1.msra.mxu0 0.0
    %271 = vmatprep.subr.mxu0 0.0
    %272 = vmatpush1.msra.mxu0 0.0
    %273 = vmatprep.subr.mxu0 0.0
    %274 = vmatpush1.msra.mxu0 0.0
    %275 = vmatprep.subr.mxu0 0.0
    %276 = vmatpush1.msra.mxu0 0.0
    %277 = vmatprep.subr.mxu0 0.0
    %278 = vmatpush1.msra.mxu0 0.0
    %279 = vmatprep.subr.mxu0 0.0
    %280 = vmatpush1.msra.mxu0 0.0
    %281 = vmatprep.subr.mxu0 0.0
    %282 = vmatpush1.msra.mxu0 0.0
    %283 = vmatprep.subr.mxu0 0.0
    %284 = vmatpush1.msra.mxu0 0.0
    %285 = vmatprep.subr.mxu0 0.0
    %286 = vmatpush1.msra.mxu0 0.0
    %287 = vmatprep.subr.mxu0 0.0
    %288 = vmatpush1.msra.mxu0 0.0
    %289 = vmatprep.subr.mxu0 0.0
    %290 = vmatpush1.msra.mxu0 0.0
    %291 = vmatprep.subr.mxu0 0.0
    %292 = vmatpush1.msra.mxu0 0.0
    %293 = vmatprep.subr.mxu0 0.0
    %294 = vmatpush1.msra.mxu0 0.0
    %295 = vmatprep.subr.mxu0 0.0
    %296 = vmatpush1.msra.mxu0 0.0
    %297 = vmatprep.subr.mxu0 0.0
    %298 = vmatpush1.msra.mxu0 0.0
    %299 = vmatprep.subr.mxu0 0.0
    %300 = vmatpush1.msra.mxu0 0.0
    %301 = vmatprep.subr.mxu0 0.0
    %302 = vmatpush1.msra.mxu0 0.0
    %303 = vmatprep.subr.mxu0 0.0
    %304 = vmatpush1.msra.mxu0 0.0
    %305 = vmatprep.subr.mxu0 0.0
    %306 = vmatpush1.msra.mxu0 0.0
    %307 = vmatprep.subr.mxu0 0.0
    %308 = vmatpush1.msra.mxu0 0.0
    %309 = vmatprep.mubr.f32.mxu0 0.0
    %310 = vmatmul.mubr.f32.gmra.mrb[0].mxu0 %v243
    %v311 = vpop.f32.mrb[0].mxu0
    %v312 = vadd.f32 0.0, %v311
    %v313 = vpop.f32.mrb[0].mxu0
    %314 = vdwg.mxu0
    %v315 = vadd.f32 %v241, %v312
    %316 = vst.msk [vmem:[#allocation4] sm:$0xff] %vm194, %v315
    %317 = vst.msk [vmem:[#allocation2] sm:$0x1] %vm232, %v204
    // Predicated region
    $region30: #{tpu_custom_call.1} parent=1 // pred_check
      %p318 = pneg %p56
    $region31: #{tpu_custom_call.1} parent=1 // pred_check_branch
      %320 = sbr.rel (%p318) target = $region33
    $region32: #{tpu_custom_call.1} parent=1 // pred_region
      %v321 = vld [vmem:[#allocation3] sm:$0x1]
      %v322 = vrcp.pop %v321
      %v323 = vld [vmem:[#allocation4] sm:$0xff]
      %v325 = vlaneseq
      %v326 = vshrl.u32 %v325, 7
      %v327 = vsub.s32 0, %v326
      %v328 = vrot.slane %v322, %v327
      %v330 = vmul.f32 %v323, %v328
      %331 = vst.msk [vmem:[#allocation11] sm:$0xff] %vm194, %v330
    $region33: #{tpu_custom_call.1} parent=1 // pred_fallthru
      _
    %s332 = scalar_lea.vmem [#allocation5], 8
    %v333 = vld [vmem:[%s332] sm:$0xff]
    %s334 = scalar_lea.vmem [#allocation8], 8
    %v335 = vld [vmem:[%s334] sm:$0xff]
    %s336 = scalar_lea.vmem [#allocation10], 8
    %v337 = vld [vmem:[%s336] sm:$0xff]
    %338 = vxpose.xlu0.b32.start [1/16] %v335, 128
    %339 = vxpose.xlu0.b32.cont [2/16] 0.0, 128
    %340 = vxpose.xlu0.b32.cont [3/16] 0.0, 128
    %341 = vxpose.xlu0.b32.cont [4/16] 0.0, 128
    %342 = vxpose.xlu0.b32.cont [5/16] 0.0, 128
    %343 = vxpose.xlu0.b32.cont [6/16] 0.0, 128
    %344 = vxpose.xlu0.b32.cont [7/16] 0.0, 128
    %345 = vxpose.xlu0.b32.cont [8/16] 0.0, 128
    %346 = vxpose.xlu0.b32.cont [9/16] 0.0, 128
    %347 = vxpose.xlu0.b32.cont [10/16] 0.0, 128
    %348 = vxpose.xlu0.b32.cont [11/16] 0.0, 128
    %349 = vxpose.xlu0.b32.cont [12/16] 0.0, 128
    %350 = vxpose.xlu0.b32.cont [13/16] 0.0, 128
    %351 = vxpose.xlu0.b32.cont [14/16] 0.0, 128
    %352 = vxpose.xlu0.b32.cont [15/16] 0.0, 128
    %353 = vxpose.xlu0.b32.end [16/16] 0.0, 128
    %v354 = vpop.trf.xlu0
    %v355 = vpop.trf.xlu0
    %v356 = vpop.trf.xlu0
    %v357 = vpop.trf.xlu0
    %v358 = vpop.trf.xlu0
    %v359 = vpop.trf.xlu0
    %v360 = vpop.trf.xlu0
    %v361 = vpop.trf.xlu0
    %v362 = vpop.trf.xlu0
    %v363 = vpop.trf.xlu0
    %v364 = vpop.trf.xlu0
    %v365 = vpop.trf.xlu0
    %v366 = vpop.trf.xlu0
    %v367 = vpop.trf.xlu0
    %v368 = vpop.trf.xlu0
    %v369 = vpop.trf.xlu0
    %v371 = vsel %vm109, %v354, 0
    %v374 = vsel %vm109, %v355, 0
    %376 = vmatprep.subr.mxu0 0.0
    %377 = vmatpush1.msra.mxu0 %v333
    %378 = vmatprep.subr.mxu0 0.0
    %379 = vmatpush1.msra.mxu0 0.0
    %380 = vmatprep.subr.mxu0 0.0
    %381 = vmatpush1.msra.mxu0 0.0
    %382 = vmatprep.subr.mxu0 0.0
    %383 = vmatpush1.msra.mxu0 0.0
    %384 = vmatprep.subr.mxu0 0.0
    %385 = vmatpush1.msra.mxu0 0.0
    %386 = vmatprep.subr.mxu0 0.0
    %387 = vmatpush1.msra.mxu0 0.0
    %388 = vmatprep.subr.mxu0 0.0
    %389 = vmatpush1.msra.mxu0 0.0
    %390 = vmatprep.subr.mxu0 0.0
    %391 = vmatpush1.msra.mxu0 0.0
    %392 = vmatprep.subr.mxu0 0.0
    %393 = vmatpush1.msra.mxu0 0.0
    %394 = vmatprep.subr.mxu0 0.0
    %395 = vmatpush1.msra.mxu0 0.0
    %396 = vmatprep.subr.mxu0 0.0
    %397 = vmatpush1.msra.mxu0 0.0
    %398 = vmatprep.subr.mxu0 0.0
    %399 = vmatpush1.msra.mxu0 0.0
    %400 = vmatprep.subr.mxu0 0.0
    %401 = vmatpush1.msra.mxu0 0.0
    %402 = vmatprep.subr.mxu0 0.0
    %403 = vmatpush1.msra.mxu0 0.0
    %404 = vmatprep.subr.mxu0 0.0
    %405 = vmatpush1.msra.mxu0 0.0
    %406 = vmatprep.subr.mxu0 0.0
    %407 = vmatpush1.msra.mxu0 0.0
    %408 = vmatprep.subr.mxu0 0.0
    %409 = vmatpush1.msra.mxu0 0.0
    %410 = vmatprep.subr.mxu0 0.0
    %411 = vmatpush1.msra.mxu0 0.0
    %412 = vmatprep.subr.mxu0 0.0
    %413 = vmatpush1.msra.mxu0 0.0
    %414 = vmatprep.subr.mxu0 0.0
    %415 = vmatpush1.msra.mxu0 0.0
    %416 = vmatprep.subr.mxu0 0.0
    %417 = vmatpush1.msra.mxu0 0.0
    %418 = vmatprep.subr.mxu0 0.0
    %419 = vmatpush1.msra.mxu0 0.0
    %420 = vmatprep.subr.mxu0 0.0
    %421 = vmatpush1.msra.mxu0 0.0
    %422 = vmatprep.subr.mxu0 0.0
    %423 = vmatpush1.msra.mxu0 0.0
    %424 = vmatprep.subr.mxu0 0.0
    %425 = vmatpush1.msra.mxu0 0.0
    %426 = vmatprep.subr.mxu0 0.0
    %427 = vmatpush1.msra.mxu0 0.0
    %428 = vmatprep.subr.mxu0 0.0
    %429 = vmatpush1.msra.mxu0 0.0
    %430 = vmatprep.subr.mxu0 0.0
    %431 = vmatpush1.msra.mxu0 0.0
    %432 = vmatprep.subr.mxu0 0.0
    %433 = vmatpush1.msra.mxu0 0.0
    %434 = vmatprep.subr.mxu0 0.0
    %435 = vmatpush1.msra.mxu0 0.0
    %436 = vmatprep.subr.mxu0 0.0
    %437 = vmatpush1.msra.mxu0 0.0
    %438 = vmatprep.subr.mxu0 0.0
    %439 = vmatpush1.msra.mxu0 0.0
    %440 = vmatprep.mubr.f32.mxu0 0.0
    %441 = vmatmul.mubr.f32.gmra.mrb[0].mxu0 %v371
    %v442 = vpop.f32.mrb[0].mxu0
    %v443 = vadd.f32 0.0, %v442
    %v444 = vpop.f32.mrb[0].mxu0
    %445 = vmatprep.mubr.f32.mxu0 0.0
    %446 = vmatmul.mubr.f32.gmra.mrb[0].mxu0 %v374
    %v447 = vpop.f32.mrb[0].mxu0
    %v448 = vadd.f32 0.0, %v447
    %v449 = vpop.f32.mrb[0].mxu0
    %450 = vdwg.mxu0
    %v451 = vmul.f32 %v443, 0.35355338
    %v452 = vmul.f32 %v448, 0.35355338
    %s453 = scalar_lea.vmem [#allocation2], 1
    %v454 = vld [vmem:[%s453] sm:$0x1]
    %v455 = vsel %vm194, %v451, -inf
    %v456 = vsel %vm194, %v452, -inf
    %v457 = vmax.f32 %v455, %v456
    %v458 = vrot.slane %v457, 4
    %v459 = vmax.f32 %v457, %v458
    %v460 = vrot.slane %v459, 2
    %v461 = vmax.f32 %v459, %v460
    %v462 = vrot.slane %v461, 1
    %v463 = vmax.f32 %v461, %v462
    %v464 = vmax.f32 %v454, %v463
    %v465 = vsub.f32 %v454, %v464
    %v466 = vmul.f32 %v465, 1.442695
    %v467 = vpow.pop %v466
    %v469 = vlaneseq
    %v470 = vshrl.u32 %v469, 7
    %v471 = vsub.s32 0, %v470
    %v472 = vrot.slane %v464, %v471
    %v474 = vsub.f32 %v451, %v472
    %v475 = vsub.f32 %v452, %v472
    %v476 = vmul.f32 %v474, 1.442695
    %v477 = vpow.pop %v476
    %v478 = vmul.f32 %v475, 1.442695
    %v479 = vpow.pop %v478
    %s480 = scalar_lea.vmem [#allocation3], 1
    %v481 = vld [vmem:[%s480] sm:$0x1]
    %v482 = vmul.f32 %v467, %v481
    %v483 = vsel %vm194, %v477, 0.0
    %v484 = vsel %vm194, %v479, 0.0
    %v485 = vadd.f32 %v483, %v484
    %v486 = vrot.slane %v485, 4
    %v487 = vadd.f32 %v485, %v486
    %v488 = vrot.slane %v487, 2
    %v489 = vadd.f32 %v487, %v488
    %v490 = vrot.slane %v489, 1
    %v491 = vadd.f32 %v489, %v490
    %v492 = vadd.f32 %v482, %v491
    %493 = vst.msk [vmem:[%s480] sm:$0x1] %vm232, %v492
    %s494 = scalar_lea.vmem [#allocation4], 8
    %v495 = vld [vmem:[%s494] sm:$0xff]
    %v497 = vlaneseq
    %v498 = vshrl.u32 %v497, 7
    %v499 = vsub.s32 0, %v498
    %v500 = vrot.slane %v467, %v499
    %v502 = vmul.f32 %v500, %v495
    %v504 = vsel %vm194, %v337, 0
    %506 = vmatprep.subr.mxu0 0.0
    %507 = vmatpush1.msra.mxu0 %v477
    %508 = vmatprep.subr.mxu0 0.0
    %509 = vmatpush1.msra.mxu0 %v479
    %510 = vmatprep.subr.mxu0 0.0
    %511 = vmatpush1.msra.mxu0 0.0
    %512 = vmatprep.subr.mxu0 0.0
    %513 = vmatpush1.msra.mxu0 0.0
    %514 = vmatprep.subr.mxu0 0.0
    %515 = vmatpush1.msra.mxu0 0.0
    %516 = vmatprep.subr.mxu0 0.0
    %517 = vmatpush1.msra.mxu0 0.0
    %518 = vmatprep.subr.mxu0 0.0
    %519 = vmatpush1.msra.mxu0 0.0
    %520 = vmatprep.subr.mxu0 0.0
    %521 = vmatpush1.msra.mxu0 0.0
    %522 = vmatprep.subr.mxu0 0.0
    %523 = vmatpush1.msra.mxu0 0.0
    %524 = vmatprep.subr.mxu0 0.0
    %525 = vmatpush1.msra.mxu0 0.0
    %526 = vmatprep.subr.mxu0 0.0
    %527 = vmatpush1.msra.mxu0 0.0
    %528 = vmatprep.subr.mxu0 0.0
    %529 = vmatpush1.msra.mxu0 0.0
    %530 = vmatprep.subr.mxu0 0.0
    %531 = vmatpush1.msra.mxu0 0.0
    %532 = vmatprep.subr.mxu0 0.0
    %533 = vmatpush1.msra.mxu0 0.0
    %534 = vmatprep.subr.mxu0 0.0
    %535 = vmatpush1.msra.mxu0 0.0
    %536 = vmatprep.subr.mxu0 0.0
    %537 = vmatpush1.msra.mxu0 0.0
    %538 = vmatprep.subr.mxu0 0.0
    %539 = vmatpush1.msra.mxu0 0.0
    %540 = vmatprep.subr.mxu0 0.0
    %541 = vmatpush1.msra.mxu0 0.0
    %542 = vmatprep.subr.mxu0 0.0
    %543 = vmatpush1.msra.mxu0 0.0
    %544 = vmatprep.subr.mxu0 0.0
    %545 = vmatpush1.msra.mxu0 0.0
    %546 = vmatprep.subr.mxu0 0.0
    %547 = vmatpush1.msra.mxu0 0.0
    %548 = vmatprep.subr.mxu0 0.0
    %549 = vmatpush1.msra.mxu0 0.0
    %550 = vmatprep.subr.mxu0 0.0
    %551 = vmatpush1.msra.mxu0 0.0
    %552 = vmatprep.subr.mxu0 0.0
    %553 = vmatpush1.msra.mxu0 0.0
    %554 = vmatprep.subr.mxu0 0.0
    %555 = vmatpush1.msra.mxu0 0.0
    %556 = vmatprep.subr.mxu0 0.0
    %557 = vmatpush1.msra.mxu0 0.0
    %558 = vmatprep.subr.mxu0 0.0
    %559 = vmatpush1.msra.mxu0 0.0
    %560 = vmatprep.subr.mxu0 0.0
    %561 = vmatpush1.msra.mxu0 0.0
    %562 = vmatprep.subr.mxu0 0.0
    %563 = vmatpush1.msra.mxu0 0.0
    %564 = vmatprep.subr.mxu0 0.0
    %565 = vmatpush1.msra.mxu0 0.0
    %566 = vmatprep.subr.mxu0 0.0
    %567 = vmatpush1.msra.mxu0 0.0
    %568 = vmatprep.subr.mxu0 0.0
    %569 = vmatpush1.msra.mxu0 0.0
    %570 = vmatprep.mubr.f32.mxu0 0.0
    %571 = vmatmul.mubr.f32.gmra.mrb[0].mxu0 %v504
    %v572 = vpop.f32.mrb[0].mxu0
    %v573 = vadd.f32 0.0, %v572
    %v574 = vpop.f32.mrb[0].mxu0
    %575 = vdwg.mxu0
    %v576 = vadd.f32 %v502, %v573
    %577 = vst.msk [vmem:[%s494] sm:$0xff] %vm194, %v576
    %578 = vst.msk [vmem:[%s453] sm:$0x1] %vm232, %v464
    // Predicated region
    $region34: #{tpu_custom_call.1} parent=1 // pred_check
      %p579 = pneg %p56
    $region35: #{tpu_custom_call.1} parent=1 // pred_check_branch
      %581 = sbr.rel (%p579) target = $region37
    $region36: #{tpu_custom_call.1} parent=1 // pred_region
      %v582 = vld [vmem:[%s480] sm:$0x1]
      %v583 = vrcp.pop %v582
      %v584 = vld [vmem:[%s494] sm:$0xff]
      %v586 = vlaneseq
      %v587 = vshrl.u32 %v586, 7
      %v588 = vsub.s32 0, %v587
      %v589 = vrot.slane %v583, %v588
      %v591 = vmul.f32 %v584, %v589
      %s592 = scalar_lea.vmem [#allocation11], 8
      %593 = vst.msk [vmem:[%s592] sm:$0xff] %vm194, %v591
    $region37: #{tpu_custom_call.1} parent=1 // pred_fallthru
      _
    %s594 = scalar_lea.vmem [#allocation5], 16
    %v595 = vld [vmem:[%s594] sm:$0xff]
    %s596 = scalar_lea.vmem [#allocation8], 16
    %v597 = vld [vmem:[%s596] sm:$0xff]
    %s598 = scalar_lea.vmem [#allocation10], 16
    %v599 = vld [vmem:[%s598] sm:$0xff]
    %600 = vxpose.xlu0.b32.start [1/16] %v597, 128
    %601 = vxpose.xlu0.b32.cont [2/16] 0.0, 128
    %602 = vxpose.xlu0.b32.cont [3/16] 0.0, 128
    %603 = vxpose.xlu0.b32.cont [4/16] 0.0, 128
    %604 = vxpose.xlu0.b32.cont [5/16] 0.0, 128
    %605 = vxpose.xlu0.b32.cont [6/16] 0.0, 128
    %606 = vxpose.xlu0.b32.cont [7/16] 0.0, 128
    %607 = vxpose.xlu0.b32.cont [8/16] 0.0, 128
    %608 = vxpose.xlu0.b32.cont [9/16] 0.0, 128
    %609 = vxpose.xlu0.b32.cont [10/16] 0.0, 128
    %610 = vxpose.xlu0.b32.cont [11/16] 0.0, 128
    %611 = vxpose.xlu0.b32.cont [12/16] 0.0, 128
    %612 = vxpose.xlu0.b32.cont [13/16] 0.0, 128
    %613 = vxpose.xlu0.b32.cont [14/16] 0.0, 128
    %614 = vxpose.xlu0.b32.cont [15/16] 0.0, 128
    %615 = vxpose.xlu0.b32.end [16/16] 0.0, 128
    %v616 = vpop.trf.xlu0
    %v617 = vpop.trf.xlu0
    %v618 = vpop.trf.xlu0
    %v619 = vpop.trf.xlu0
    %v620 = vpop.trf.xlu0
    %v621 = vpop.trf.xlu0
    %v622 = vpop.trf.xlu0
    %v623 = vpop.trf.xlu0
    %v624 = vpop.trf.xlu0
    %v625 = vpop.trf.xlu0
    %v626 = vpop.trf.xlu0
    %v627 = vpop.trf.xlu0
    %v628 = vpop.trf.xlu0
    %v629 = vpop.trf.xlu0
    %v630 = vpop.trf.xlu0
    %v631 = vpop.trf.xlu0
    %v633 = vsel %vm109, %v616, 0
    %v636 = vsel %vm109, %v617, 0
    %638 = vmatprep.subr.mxu0 0.0
    %639 = vmatpush1.msra.mxu0 %v595
    %640 = vmatprep.subr.mxu0 0.0
    %641 = vmatpush1.msra.mxu0 0.0
    %642 = vmatprep.subr.mxu0 0.0
    %643 = vmatpush1.msra.mxu0 0.0
    %644 = vmatprep.subr.mxu0 0.0
    %645 = vmatpush1.msra.mxu0 0.0
    %646 = vmatprep.subr.mxu0 0.0
    %647 = vmatpush1.msra.mxu0 0.0
    %648 = vmatprep.subr.mxu0 0.0
    %649 = vmatpush1.msra.mxu0 0.0
    %650 = vmatprep.subr.mxu0 0.0
    %651 = vmatpush1.msra.mxu0 0.0
    %652 = vmatprep.subr.mxu0 0.0
    %653 = vmatpush1.msra.mxu0 0.0
    %654 = vmatprep.subr.mxu0 0.0
    %655 = vmatpush1.msra.mxu0 0.0
    %656 = vmatprep.subr.mxu0 0.0
    %657 = vmatpush1.msra.mxu0 0.0
    %658 = vmatprep.subr.mxu0 0.0
    %659 = vmatpush1.msra.mxu0 0.0
    %660 = vmatprep.subr.mxu0 0.0
    %661 = vmatpush1.msra.mxu0 0.0
    %662 = vmatprep.subr.mxu0 0.0
    %663 = vmatpush1.msra.mxu0 0.0
    %664 = vmatprep.subr.mxu0 0.0
    %665 = vmatpush1.msra.mxu0 0.0
    %666 = vmatprep.subr.mxu0 0.0
    %667 = vmatpush1.msra.mxu0 0.0
    %668 = vmatprep.subr.mxu0 0.0
    %669 = vmatpush1.msra.mxu0 0.0
    %670 = vmatprep.subr.mxu0 0.0
    %671 = vmatpush1.msra.mxu0 0.0
    %672 = vmatprep.subr.mxu0 0.0
    %673 = vmatpush1.msra.mxu0 0.0
    %674 = vmatprep.subr.mxu0 0.0
    %675 = vmatpush1.msra.mxu0 0.0
    %676 = vmatprep.subr.mxu0 0.0
    %677 = vmatpush1.msra.mxu0 0.0
    %678 = vmatprep.subr.mxu0 0.0
    %679 = vmatpush1.msra.mxu0 0.0
    %680 = vmatprep.subr.mxu0 0.0
    %681 = vmatpush1.msra.mxu0 0.0
    %682 = vmatprep.subr.mxu0 0.0
    %683 = vmatpush1.msra.mxu0 0.0
    %684 = vmatprep.subr.mxu0 0.0
    %685 = vmatpush1.msra.mxu0 0.0
    %686 = vmatprep.subr.mxu0 0.0
    %687 = vmatpush1.msra.mxu0 0.0
    %688 = vmatprep.subr.mxu0 0.0
    %689 = vmatpush1.msra.mxu0 0.0
    %690 = vmatprep.subr.mxu0 0.0
    %691 = vmatpush1.msra.mxu0 0.0
    %692 = vmatprep.subr.mxu0 0.0
    %693 = vmatpush1.msra.mxu0 0.0
    %694 = vmatprep.subr.mxu0 0.0
    %695 = vmatpush1.msra.mxu0 0.0
    %696 = vmatprep.subr.mxu0 0.0
    %697 = vmatpush1.msra.mxu0 0.0
    %698 = vmatprep.subr.mxu0 0.0
    %699 = vmatpush1.msra.mxu0 0.0
    %700 = vmatprep.subr.mxu0 0.0
    %701 = vmatpush1.msra.mxu0 0.0
    %702 = vmatprep.mubr.f32.mxu0 0.0
    %703 = vmatmul.mubr.f32.gmra.mrb[0].mxu0 %v633
    %v704 = vpop.f32.mrb[0].mxu0
    %v705 = vadd.f32 0.0, %v704
    %v706 = vpop.f32.mrb[0].mxu0
    %707 = vmatprep.mubr.f32.mxu0 0.0
    %708 = vmatmul.mubr.f32.gmra.mrb[0].mxu0 %v636
    %v709 = vpop.f32.mrb[0].mxu0
    %v710 = vadd.f32 0.0, %v709
    %v711 = vpop.f32.mrb[0].mxu0
    %712 = vdwg.mxu0
    %v713 = vmul.f32 %v705, 0.35355338
    %v714 = vmul.f32 %v710, 0.35355338
    %s715 = scalar_lea.vmem [#allocation2], 2
    %v716 = vld [vmem:[%s715] sm:$0x1]
    %v717 = vsel %vm194, %v713, -inf
    %v718 = vsel %vm194, %v714, -inf
    %v719 = vmax.f32 %v717, %v718
    %v720 = vrot.slane %v719, 4
    %v721 = vmax.f32 %v719, %v720
    %v722 = vrot.slane %v721, 2
    %v723 = vmax.f32 %v721, %v722
    %v724 = vrot.slane %v723, 1
    %v725 = vmax.f32 %v723, %v724
    %v726 = vmax.f32 %v716, %v725
    %v727 = vsub.f32 %v716, %v726
    %v728 = vmul.f32 %v727, 1.442695
    %v729 = vpow.pop %v728
    %v731 = vlaneseq
    %v732 = vshrl.u32 %v731, 7
    %v733 = vsub.s32 0, %v732
    %v734 = vrot.slane %v726, %v733
    %v736 = vsub.f32 %v713, %v734
    %v737 = vsub.f32 %v714, %v734
    %v738 = vmul.f32 %v736, 1.442695
    %v739 = vpow.pop %v738
    %v740 = vmul.f32 %v737, 1.442695
    %v741 = vpow.pop %v740
    %s742 = scalar_lea.vmem [#allocation3], 2
    %v743 = vld [vmem:[%s742] sm:$0x1]
    %v744 = vmul.f32 %v729, %v743
    %v745 = vsel %vm194, %v739, 0.0
    %v746 = vsel %vm194, %v741, 0.0
    %v747 = vadd.f32 %v745, %v746
    %v748 = vrot.slane %v747, 4
    %v749 = vadd.f32 %v747, %v748
    %v750 = vrot.slane %v749, 2
    %v751 = vadd.f32 %v749, %v750
    %v752 = vrot.slane %v751, 1
    %v753 = vadd.f32 %v751, %v752
    %v754 = vadd.f32 %v744, %v753
    %755 = vst.msk [vmem:[%s742] sm:$0x1] %vm232, %v754
    %s756 = scalar_lea.vmem [#allocation4], 16
    %v757 = vld [vmem:[%s756] sm:$0xff]
    %v759 = vlaneseq
    %v760 = vshrl.u32 %v759, 7
    %v761 = vsub.s32 0, %v760
    %v762 = vrot.slane %v729, %v761
    %v764 = vmul.f32 %v762, %v757
    %v766 = vsel %vm194, %v599, 0
    %768 = vmatprep.subr.mxu0 0.0
    %769 = vmatpush1.msra.mxu0 %v739
    %770 = vmatprep.subr.mxu0 0.0
    %771 = vmatpush1.msra.mxu0 %v741
    %772 = vmatprep.subr.mxu0 0.0
    %773 = vmatpush1.msra.mxu0 0.0
    %774 = vmatprep.subr.mxu0 0.0
    %775 = vmatpush1.msra.mxu0 0.0
    %776 = vmatprep.subr.mxu0 0.0
    %777 = vmatpush1.msra.mxu0 0.0
    %778 = vmatprep.subr.mxu0 0.0
    %779 = vmatpush1.msra.mxu0 0.0
    %780 = vmatprep.subr.mxu0 0.0
    %781 = vmatpush1.msra.mxu0 0.0
    %782 = vmatprep.subr.mxu0 0.0
    %783 = vmatpush1.msra.mxu0 0.0
    %784 = vmatprep.subr.mxu0 0.0
    %785 = vmatpush1.msra.mxu0 0.0
    %786 = vmatprep.subr.mxu0 0.0
    %787 = vmatpush1.msra.mxu0 0.0
    %788 = vmatprep.subr.mxu0 0.0
    %789 = vmatpush1.msra.mxu0 0.0
    %790 = vmatprep.subr.mxu0 0.0
    %791 = vmatpush1.msra.mxu0 0.0
    %792 = vmatprep.subr.mxu0 0.0
    %793 = vmatpush1.msra.mxu0 0.0
    %794 = vmatprep.subr.mxu0 0.0
    %795 = vmatpush1.msra.mxu0 0.0
    %796 = vmatprep.subr.mxu0 0.0
    %797 = vmatpush1.msra.mxu0 0.0
    %798 = vmatprep.subr.mxu0 0.0
    %799 = vmatpush1.msra.mxu0 0.0
    %800 = vmatprep.subr.mxu0 0.0
    %801 = vmatpush1.msra.mxu0 0.0
    %802 = vmatprep.subr.mxu0 0.0
    %803 = vmatpush1.msra.mxu0 0.0
    %804 = vmatprep.subr.mxu0 0.0
    %805 = vmatpush1.msra.mxu0 0.0
    %806 = vmatprep.subr.mxu0 0.0
    %807 = vmatpush1.msra.mxu0 0.0
    %808 = vmatprep.subr.mxu0 0.0
    %809 = vmatpush1.msra.mxu0 0.0
    %810 = vmatprep.subr.mxu0 0.0
    %811 = vmatpush1.msra.mxu0 0.0
    %812 = vmatprep.subr.mxu0 0.0
    %813 = vmatpush1.msra.mxu0 0.0
    %814 = vmatprep.subr.mxu0 0.0
    %815 = vmatpush1.msra.mxu0 0.0
    %816 = vmatprep.subr.mxu0 0.0
    %817 = vmatpush1.msra.mxu0 0.0
    %818 = vmatprep.subr.mxu0 0.0
    %819 = vmatpush1.msra.mxu0 0.0
    %820 = vmatprep.subr.mxu0 0.0
    %821 = vmatpush1.msra.mxu0 0.0
    %822 = vmatprep.subr.mxu0 0.0
    %823 = vmatpush1.msra.mxu0 0.0
    %824 = vmatprep.subr.mxu0 0.0
    %825 = vmatpush1.msra.mxu0 0.0
    %826 = vmatprep.subr.mxu0 0.0
    %827 = vmatpush1.msra.mxu0 0.0
    %828 = vmatprep.subr.mxu0 0.0
    %829 = vmatpush1.msra.mxu0 0.0
    %830 = vmatprep.subr.mxu0 0.0
    %831 = vmatpush1.msra.mxu0 0.0
    %832 = vmatprep.mubr.f32.mxu0 0.0
    %833 = vmatmul.mubr.f32.gmra.mrb[0].mxu0 %v766
    %v834 = vpop.f32.mrb[0].mxu0
    %v835 = vadd.f32 0.0, %v834
    %v836 = vpop.f32.mrb[0].mxu0
    %837 = vdwg.mxu0
    %v838 = vadd.f32 %v764, %v835
    %839 = vst.msk [vmem:[%s756] sm:$0xff] %vm194, %v838
    %840 = vst.msk [vmem:[%s715] sm:$0x1] %vm232, %v726
    // Predicated region
    $region38: #{tpu_custom_call.1} parent=1 // pred_check
      %p841 = pneg %p56
    $region39: #{tpu_custom_call.1} parent=1 // pred_check_branch
      %843 = sbr.rel (%p841) target = $region41
    $region40: #{tpu_custom_call.1} parent=1 // pred_region
      %v844 = vld [vmem:[%s742] sm:$0x1]
      %v845 = vrcp.pop %v844
      %v846 = vld [vmem:[%s756] sm:$0xff]
      %v848 = vlaneseq
      %v849 = vshrl.u32 %v848, 7
      %v850 = vsub.s32 0, %v849
      %v851 = vrot.slane %v845, %v850
      %v853 = vmul.f32 %v846, %v851
      %s854 = scalar_lea.vmem [#allocation11], 16
      %855 = vst.msk [vmem:[%s854] sm:$0xff] %vm194, %v853
    $region41: #{tpu_custom_call.1} parent=1 // pred_fallthru
      _
    %s856 = scalar_lea.vmem [#allocation5], 24
    %v857 = vld [vmem:[%s856] sm:$0xff]
    %s858 = scalar_lea.vmem [#allocation8], 24
    %v859 = vld [vmem:[%s858] sm:$0xff]
    %s860 = scalar_lea.vmem [#allocation10], 24
    %v861 = vld [vmem:[%s860] sm:$0xff]
    %862 = vxpose.xlu0.b32.start [1/16] %v859, 128
    %863 = vxpose.xlu0.b32.cont [2/16] 0.0, 128
    %864 = vxpose.xlu0.b32.cont [3/16] 0.0, 128
    %865 = vxpose.xlu0.b32.cont [4/16] 0.0, 128
    %866 = vxpose.xlu0.b32.cont [5/16] 0.0, 128
    %867 = vxpose.xlu0.b32.cont [6/16] 0.0, 128
    %868 = vxpose.xlu0.b32.cont [7/16] 0.0, 128
    %869 = vxpose.xlu0.b32.cont [8/16] 0.0, 128
    %870 = vxpose.xlu0.b32.cont [9/16] 0.0, 128
    %871 = vxpose.xlu0.b32.cont [10/16] 0.0, 128
    %872 = vxpose.xlu0.b32.cont [11/16] 0.0, 128
    %873 = vxpose.xlu0.b32.cont [12/16] 0.0, 128
    %874 = vxpose.xlu0.b32.cont [13/16] 0.0, 128
    %875 = vxpose.xlu0.b32.cont [14/16] 0.0, 128
    %876 = vxpose.xlu0.b32.cont [15/16] 0.0, 128
    %877 = vxpose.xlu0.b32.end [16/16] 0.0, 128
    %v878 = vpop.trf.xlu0
    %v879 = vpop.trf.xlu0
    %v880 = vpop.trf.xlu0
    %v881 = vpop.trf.xlu0
    %v882 = vpop.trf.xlu0
    %v883 = vpop.trf.xlu0
    %v884 = vpop.trf.xlu0
    %v885 = vpop.trf.xlu0
    %v886 = vpop.trf.xlu0
    %v887 = vpop.trf.xlu0
    %v888 = vpop.trf.xlu0
    %v889 = vpop.trf.xlu0
    %v890 = vpop.trf.xlu0
    %v891 = vpop.trf.xlu0
    %v892 = vpop.trf.xlu0
    %v893 = vpop.trf.xlu0
    %v895 = vsel %vm109, %v878, 0
    %v898 = vsel %vm109, %v879, 0
    %900 = vmatprep.subr.mxu0 0.0
    %901 = vmatpush1.msra.mxu0 %v857
    %902 = vmatprep.subr.mxu0 0.0
    %903 = vmatpush1.msra.mxu0 0.0
    %904 = vmatprep.subr.mxu0 0.0
    %905 = vmatpush1.msra.mxu0 0.0
    %906 = vmatprep.subr.mxu0 0.0
    %907 = vmatpush1.msra.mxu0 0.0
    %908 = vmatprep.subr.mxu0 0.0
    %909 = vmatpush1.msra.mxu0 0.0
    %910 = vmatprep.subr.mxu0 0.0
    %911 = vmatpush1.msra.mxu0 0.0
    %912 = vmatprep.subr.mxu0 0.0
    %913 = vmatpush1.msra.mxu0 0.0
    %914 = vmatprep.subr.mxu0 0.0
    %915 = vmatpush1.msra.mxu0 0.0
    %916 = vmatprep.subr.mxu0 0.0
    %917 = vmatpush1.msra.mxu0 0.0
    %918 = vmatprep.subr.mxu0 0.0
    %919 = vmatpush1.msra.mxu0 0.0
    %920 = vmatprep.subr.mxu0 0.0
    %921 = vmatpush1.msra.mxu0 0.0
    %922 = vmatprep.subr.mxu0 0.0
    %923 = vmatpush1.msra.mxu0 0.0
    %924 = vmatprep.subr.mxu0 0.0
    %925 = vmatpush1.msra.mxu0 0.0
    %926 = vmatprep.subr.mxu0 0.0
    %927 = vmatpush1.msra.mxu0 0.0
    %928 = vmatprep.subr.mxu0 0.0
    %929 = vmatpush1.msra.mxu0 0.0
    %930 = vmatprep.subr.mxu0 0.0
    %931 = vmatpush1.msra.mxu0 0.0
    %932 = vmatprep.subr.mxu0 0.0
    %933 = vmatpush1.msra.mxu0 0.0
    %934 = vmatprep.subr.mxu0 0.0
    %935 = vmatpush1.msra.mxu0 0.0
    %936 = vmatprep.subr.mxu0 0.0
    %937 = vmatpush1.msra.mxu0 0.0
    %938 = vmatprep.subr.mxu0 0.0
    %939 = vmatpush1.msra.mxu0 0.0
    %940 = vmatprep.subr.mxu0 0.0
    %941 = vmatpush1.msra.mxu0 0.0
    %942 = vmatprep.subr.mxu0 0.0
    %943 = vmatpush1.msra.mxu0 0.0
    %944 = vmatprep.subr.mxu0 0.0
    %945 = vmatpush1.msra.mxu0 0.0
    %946 = vmatprep.subr.mxu0 0.0
    %947 = vmatpush1.msra.mxu0 0.0
    %948 = vmatprep.subr.mxu0 0.0
    %949 = vmatpush1.msra.mxu0 0.0
    %950 = vmatprep.subr.mxu0 0.0
    %951 = vmatpush1.msra.mxu0 0.0
    %952 = vmatprep.subr.mxu0 0.0
    %953 = vmatpush1.msra.mxu0 0.0
    %954 = vmatprep.subr.mxu0 0.0
    %955 = vmatpush1.msra.mxu0 0.0
    %956 = vmatprep.subr.mxu0 0.0
    %957 = vmatpush1.msra.mxu0 0.0
    %958 = vmatprep.subr.mxu0 0.0
    %959 = vmatpush1.msra.mxu0 0.0
    %960 = vmatprep.subr.mxu0 0.0
    %961 = vmatpush1.msra.mxu0 0.0
    %962 = vmatprep.subr.mxu0 0.0
    %963 = vmatpush1.msra.mxu0 0.0
    %964 = vmatprep.mubr.f32.mxu0 0.0
    %965 = vmatmul.mubr.f32.gmra.mrb[0].mxu0 %v895
    %v966 = vpop.f32.mrb[0].mxu0
    %v967 = vadd.f32 0.0, %v966
    %v968 = vpop.f32.mrb[0].mxu0
    %969 = vmatprep.mubr.f32.mxu0 0.0
    %970 = vmatmul.mubr.f32.gmra.mrb[0].mxu0 %v898
    %v971 = vpop.f32.mrb[0].mxu0
    %v972 = vadd.f32 0.0, %v971
    %v973 = vpop.f32.mrb[0].mxu0
    %974 = vdwg.mxu0
    %v975 = vmul.f32 %v967, 0.35355338
    %v976 = vmul.f32 %v972, 0.35355338
    %s977 = scalar_lea.vmem [#allocation2], 3
    %v978 = vld [vmem:[%s977] sm:$0x1]
    %v979 = vsel %vm194, %v975, -inf
    %v980 = vsel %vm194, %v976, -inf
    %v981 = vmax.f32 %v979, %v980
    %v982 = vrot.slane %v981, 4
    %v983 = vmax.f32 %v981, %v982
    %v984 = vrot.slane %v983, 2
    %v985 = vmax.f32 %v983, %v984
    %v986 = vrot.slane %v985, 1
    %v987 = vmax.f32 %v985, %v986
    %v988 = vmax.f32 %v978, %v987
    %v989 = vsub.f32 %v978, %v988
    %v990 = vmul.f32 %v989, 1.442695
    %v991 = vpow.pop %v990
    %v993 = vlaneseq
    %v994 = vshrl.u32 %v993, 7
    %v995 = vsub.s32 0, %v994
    %v996 = vrot.slane %v988, %v995
    %v998 = vsub.f32 %v975, %v996
    %v999 = vsub.f32 %v976, %v996
    %v1000 = vmul.f32 %v998, 1.442695
    %v1001 = vpow.pop %v1000
    %v1002 = vmul.f32 %v999, 1.442695
    %v1003 = vpow.pop %v1002
    %s1004 = scalar_lea.vmem [#allocation3], 3
    %v1005 = vld [vmem:[%s1004] sm:$0x1]
    %v1006 = vmul.f32 %v991, %v1005
    %v1007 = vsel %vm194, %v1001, 0.0
    %v1008 = vsel %vm194, %v1003, 0.0
    %v1009 = vadd.f32 %v1007, %v1008
    %v1010 = vrot.slane %v1009, 4
    %v1011 = vadd.f32 %v1009, %v1010
    %v1012 = vrot.slane %v1011, 2
    %v1013 = vadd.f32 %v1011, %v1012
    %v1014 = vrot.slane %v1013, 1
    %v1015 = vadd.f32 %v1013, %v1014
    %v1016 = vadd.f32 %v1006, %v1015
    %1017 = vst.msk [vmem:[%s1004] sm:$0x1] %vm232, %v1016
    %s1018 = scalar_lea.vmem [#allocation4], 24
    %v1019 = vld [vmem:[%s1018] sm:$0xff]
    %v1021 = vlaneseq
    %v1022 = vshrl.u32 %v1021, 7
    %v1023 = vsub.s32 0, %v1022
    %v1024 = vrot.slane %v991, %v1023
    %v1026 = vmul.f32 %v1024, %v1019
    %v1028 = vsel %vm194, %v861, 0
    %1030 = vmatprep.subr.mxu0 0.0
    %1031 = vmatpush1.msra.mxu0 %v1001
    %1032 = vmatprep.subr.mxu0 0.0
    %1033 = vmatpush1.msra.mxu0 %v1003
    %1034 = vmatprep.subr.mxu0 0.0
    %1035 = vmatpush1.msra.mxu0 0.0
    %1036 = vmatprep.subr.mxu0 0.0
    %1037 = vmatpush1.msra.mxu0 0.0
    %1038 = vmatprep.subr.mxu0 0.0
    %1039 = vmatpush1.msra.mxu0 0.0
    %1040 = vmatprep.subr.mxu0 0.0
    %1041 = vmatpush1.msra.mxu0 0.0
    %1042 = vmatprep.subr.mxu0 0.0
    %1043 = vmatpush1.msra.mxu0 0.0
    %1044 = vmatprep.subr.mxu0 0.0
    %1045 = vmatpush1.msra.mxu0 0.0
    %1046 = vmatprep.subr.mxu0 0.0
    %1047 = vmatpush1.msra.mxu0 0.0
    %1048 = vmatprep.subr.mxu0 0.0
    %1049 = vmatpush1.msra.mxu0 0.0
    %1050 = vmatprep.subr.mxu0 0.0
    %1051 = vmatpush1.msra.mxu0 0.0
    %1052 = vmatprep.subr.mxu0 0.0
    %1053 = vmatpush1.msra.mxu0 0.0
    %1054 = vmatprep.subr.mxu0 0.0
    %1055 = vmatpush1.msra.mxu0 0.0
    %1056 = vmatprep.subr.mxu0 0.0
    %1057 = vmatpush1.msra.mxu0 0.0
    %1058 = vmatprep.subr.mxu0 0.0
    %1059 = vmatpush1.msra.mxu0 0.0
    %1060 = vmatprep.subr.mxu0 0.0
    %1061 = vmatpush1.msra.mxu0 0.0
    %1062 = vmatprep.subr.mxu0 0.0
    %1063 = vmatpush1.msra.mxu0 0.0
    %1064 = vmatprep.subr.mxu0 0.0
    %1065 = vmatpush1.msra.mxu0 0.0
    %1066 = vmatprep.subr.mxu0 0.0
    %1067 = vmatpush1.msra.mxu0 0.0
    %1068 = vmatprep.subr.mxu0 0.0
    %1069 = vmatpush1.msra.mxu0 0.0
    %1070 = vmatprep.subr.mxu0 0.0
    %1071 = vmatpush1.msra.mxu0 0.0
    %1072 = vmatprep.subr.mxu0 0.0
    %1073 = vmatpush1.msra.mxu0 0.0
    %1074 = vmatprep.subr.mxu0 0.0
    %1075 = vmatpush1.msra.mxu0 0.0
    %1076 = vmatprep.subr.mxu0 0.0
    %1077 = vmatpush1.msra.mxu0 0.0
    %1078 = vmatprep.subr.mxu0 0.0
    %1079 = vmatpush1.msra.mxu0 0.0
    %1080 = vmatprep.subr.mxu0 0.0
    %1081 = vmatpush1.msra.mxu0 0.0
    %1082 = vmatprep.subr.mxu0 0.0
    %1083 = vmatpush1.msra.mxu0 0.0
    %1084 = vmatprep.subr.mxu0 0.0
    %1085 = vmatpush1.msra.mxu0 0.0
    %1086 = vmatprep.subr.mxu0 0.0
    %1087 = vmatpush1.msra.mxu0 0.0
    %1088 = vmatprep.subr.mxu0 0.0
    %1089 = vmatpush1.msra.mxu0 0.0
    %1090 = vmatprep.subr.mxu0 0.0
    %1091 = vmatpush1.msra.mxu0 0.0
    %1092 = vmatprep.subr.mxu0 0.0
    %1093 = vmatpush1.msra.mxu0 0.0
    %1094 = vmatprep.mubr.f32.mxu0 0.0
    %1095 = vmatmul.mubr.f32.gmra.mrb[0].mxu0 %v1028
    %v1096 = vpop.f32.mrb[0].mxu0
    %v1097 = vadd.f32 0.0, %v1096
    %v1098 = vpop.f32.mrb[0].mxu0
    %1099 = vdwg.mxu0
    %v1100 = vadd.f32 %v1026, %v1097
    %1101 = vst.msk [vmem:[%s1018] sm:$0xff] %vm194, %v1100
    %1102 = vst.msk [vmem:[%s977] sm:$0x1] %vm232, %v988
    // Predicated region
    $region42: #{tpu_custom_call.1} parent=1 // pred_check
      %p1103 = pneg %p56
    $region43: #{tpu_custom_call.1} parent=1 // pred_check_branch
      %1105 = sbr.rel (%p1103) target = $region45
    $region44: #{tpu_custom_call.1} parent=1 // pred_region
      %v1106 = vld [vmem:[%s1004] sm:$0x1]
      %v1107 = vrcp.pop %v1106
      %v1108 = vld [vmem:[%s1018] sm:$0xff]
      %v1110 = vlaneseq
      %v1111 = vshrl.u32 %v1110, 7
      %v1112 = vsub.s32 0, %v1111
      %v1113 = vrot.slane %v1107, %v1112
      %v1115 = vmul.f32 %v1108, %v1113
      %s1116 = scalar_lea.vmem [#allocation11], 24
      %1117 = vst.msk [vmem:[%s1116] sm:$0xff] %vm194, %v1115
    $region45: #{tpu_custom_call.1} parent=1 // pred_fallthru
      _
    // Predicated region
    $region46: #{tpu_custom_call.1} parent=1 // pred_check
      _
    $region47: #{tpu_custom_call.1} parent=1 // pred_check_branch
      %1119 = sbr.rel (0) target = $region49
    $region48: #{tpu_custom_call.1} parent=1 // pred_region
      %s1121 = ssub.s32 512, 512
      %1122 = vsyncadd [#allocation7], %s1121
      %s1123 = sshll.u32 [#allocation11], 4
      %s1124 = int_to_ptr.vmem [resolvable:$true] %s1123
      %1129 = dma.vmem_to_hbm [thread:$0]  %s1124, 512, %s3, [#allocation7], 128, 128, 8
    $region49: #{tpu_custom_call.1} parent=1 // pred_fallthru
      _
    // Predicated region
    $region50: #{tpu_custom_call.1} parent=1 // pred_check
      _
    $region51: #{tpu_custom_call.1} parent=1 // pred_check_branch
      %1131 = sbr.rel (0) target = $region53
    $region52: #{tpu_custom_call.1} parent=1 // pred_region
      %1132 = dma.done [#allocation7], 512
    $region53: #{tpu_custom_call.1} parent=1 // pred_fallthru
      _
    %1133 = vsyncpa [#allocation6], 1
    %1134 = vsyncpa [#allocation9], 1
    %1135 = vsyncpa [#allocation7], 1

</llo_original>
